<compile_context>
chip_gen: v7x
topology: tpu7x:2x2x1
jax: 0.10.0
libtpu: 0.0.40
codegen_flags: <defaults>
</compile_context>

<pallas_src>
import jax
import jax.numpy as jnp
import numpy as np
from jax.experimental import pallas as pl
from jax.experimental.pallas import tpu as pltpu


def se_basic_block_kernel(x_ref, wb1_ref, b1_ref, wb2_ref, b2_ref,
                          a1_ref, a2_ref, out_ref, lhs_ref):
    NB, H, WC = x_ref.shape          # Nb images per step, H rows, W*C lanes
    M = NB * H

    def build_lhs(src_f32):
        """Pack the three kh-shifted copies of src (Nb,H,WC) side-by-side into
        the (Nb, H, 3*WC) concatenated-LHS scratch; the H halo is handled by
        zeroing one boundary row per shifted block (two tiny lane-dense
        stores).  The kw taps / channels / W zero-padding are already folded
        into the banded weight matrix on the host."""
        zrow = jnp.zeros((NB, 1, WC), jnp.float32)
        # kh = 1 (center): aligned full-block store
        lhs_ref[:, :, WC:2 * WC] = src_f32
        # kh = 0: output row h reads input row h-1; row 0 reads the zero halo
        lhs_ref[:, 1:H, 0:WC] = src_f32[:, 0:H - 1, :]
        lhs_ref[:, 0:1, 0:WC] = zrow
        # kh = 2: output row h reads input row h+1; row H-1 reads the zero halo
        lhs_ref[:, 0:H - 1, 2 * WC:3 * WC] = src_f32[:, 1:H, :]
        lhs_ref[:, H - 1:H, 2 * WC:3 * WC] = zrow

    def conv_bn(wb_ref, b_ref):
        # One bf16 MXU matmul per conv: (Nb*H, 3*WC) @ (3*WC, WC), f32 acc.
        # BN scale is pre-folded into wb; only the bias add stays here.
        lhs = lhs_ref[...].reshape(M, 3 * WC).astype(jnp.bfloat16)
        acc = jnp.dot(lhs, wb_ref[...], preferred_element_type=jnp.float32)
        return acc + b_ref[...]                         # (M, WC) f32

    # conv1 -> folded bn1 -> relu
    build_lhs(x_ref[...].astype(jnp.float32))
    out1 = jnp.maximum(conv_bn(wb1_ref, b1_ref), 0.0)

    # conv2 -> folded bn2 (reuse the same LHS scratch)
    build_lhs(out1.reshape(NB, H, WC))
    out2 = conv_bn(wb2_ref, b2_ref)                     # (M, WC) f32

    # Squeeze-and-Excitation + residual per image, entirely on VPU/XLU/EUP
    # (keeps the MXU free; NB is a small static constant, so the Python loop
    # just unrolls the same lane-dense 2-D code per image).
    #   a1 = tile_W(fc1.weight.T) / W  -> (Ch, W*C)  (1/W pooling factor folded)
    #   a2 = tile_W(fc2.weight.T)      -> (Ch, W*C)
    for n in range(NB):
        o2 = out2[n * H:(n + 1) * H, :]                            # (H, WC)
        y = jnp.mean(o2, axis=0, keepdims=True)                    # (1, WC)
        hidden = jnp.maximum(
            jnp.sum(y * a1_ref[...], axis=1, keepdims=True), 0.0)  # (Ch, 1)
        gate = jax.nn.sigmoid(
            jnp.sum(hidden * a2_ref[...], axis=0, keepdims=True))  # (1, WC)
        # channel gate + identity residual + relu, lane-dense f32 store
        res = jnp.maximum(o2 * gate + x_ref[n].astype(jnp.float32), 0.0)
        out_ref[n] = res


def _fused_conv_bn_weights(w_hwio, scale, W):
    """Fold a 3x3 conv (HWIO weights) + the per-output-channel BN scale into a
    single block-banded (3*W*Cin, W*Cout) bf16 matrix.  The kw taps, all input
    channels, the width-axis zero padding AND the BN scale are absorbed, so
    each conv becomes one lane-dense K = 3*W*Cin matmul.  Row ordering is
    kh-major to match the concatenated-LHS column ordering in the kernel.
    One-time host-side prep."""
    w = np.asarray(w_hwio, dtype=np.float32)            # (3, 3, Cin, Cout)
    s = np.asarray(scale, dtype=np.float32)             # (Cout,)
    _, _, ci, co = w.shape
    B = np.zeros((3, W * ci, W * co), np.float32)
    for kh in range(3):
        for wo in range(W):
            for kw in range(3):
                wi = wo + kw - 1
                if 0 <= wi < W:
                    B[kh, wi * ci:(wi + 1) * ci, wo * co:(wo + 1) * co] = w[kh, kw]
    B = B * np.tile(s, W)[None, None, :]                 # fold BN scale per (w,c)
    return jnp.asarray(B.reshape(3 * W * ci, W * co)).astype(jnp.bfloat16)


def se_basic_block(x_nchw, params, *, images_per_step=2):
    """x_nchw: (N, C, H, W) float32.  Returns (N, C, H, W) float32."""
    # TODO(synk): downsample path not implemented (module instantiated with
    # downsample=None, stride=1), so the residual is the identity.
    # TODO(synk): for real ResNet sizes the banded weights are O(W^2*C^2) and
    # would blow v7x's 64 MiB VMEM; the width axis should then be tiled
    # (block-banded weights with a 1-column halo, or weights left in HBM with
    # memory_space=pl.ANY and a single-buffered VMEM weight buffer).
    x = jnp.transpose(x_nchw, (0, 2, 3, 1))              # NCHW -> NHWC
    N, H, W, C = x.shape
    Ch = params["se_w1"].shape[1]
    WC = W * C

    # Images per grid step: batches M = NB*H rows per MXU matmul while keeping
    # >= 2 grid steps so both v7x TensorCores get work.
    NB = min(images_per_step, N)
    while NB > 1 and (N % NB != 0 or (N // NB) < 2):
        NB -= 1

    # activations shipped as bf16 (halves HBM->VMEM activation DMA), flattened
    # to the lane-dense (N, H, W*C) layout (free reshape on the host side).
    x2d = x.reshape(N, H, WC).astype(jnp.bfloat16)

    # one-time host-side parameter prep (BN scale folded into conv weights)
    wb1 = _fused_conv_bn_weights(params["w1"], params["s1"], W)   # (3*WC, WC)
    wb2 = _fused_conv_bn_weights(params["w2"], params["s2"], W)
    b1w = jnp.tile(params["b1"], W).reshape(1, WC)                # folded BN bias
    b2w = jnp.tile(params["b2"], W).reshape(1, WC)
    a1 = jnp.tile(params["se_w1"].T, (1, W)) / float(W)           # (Ch, W*C)
    a2 = jnp.tile(params["se_w2"], (1, W))                        # (Ch, W*C)

    out = pl.pallas_call(
        se_basic_block_kernel,
        out_shape=jax.ShapeDtypeStruct((N, H, WC), jnp.float32),
        grid_spec=pltpu.PrefetchScalarGridSpec(
            num_scalar_prefetch=0,
            grid=(N // NB,),
            in_specs=[
                pl.BlockSpec((NB, H, WC), lambda n: (n, 0, 0)),
                pl.BlockSpec((3 * WC, WC), lambda n: (0, 0)),
                pl.BlockSpec((1, WC), lambda n: (0, 0)),
                pl.BlockSpec((3 * WC, WC), lambda n: (0, 0)),
                pl.BlockSpec((1, WC), lambda n: (0, 0)),
                pl.BlockSpec((Ch, WC), lambda n: (0, 0)),
                pl.BlockSpec((Ch, WC), lambda n: (0, 0)),
            ],
            out_specs=pl.BlockSpec((NB, H, WC), lambda n: (n, 0, 0)),
            # concatenated-LHS scratch (f32; bf16 cast happens once per conv)
            scratch_shapes=[pltpu.VMEM((NB, H, 3 * WC), jnp.float32)],
        ),
        compiler_params=pltpu.CompilerParams(
            dimension_semantics=("parallel",)),
    )(x2d, wb1, b1w, wb2, b2w, a1, a2)

    out = out.reshape(N, H, W, C)
    return jnp.transpose(out, (0, 3, 1, 2))              # -> NCHW


def make_params(key, C, reduction):
    """Deterministic synthetic parameters (shapes match the nn.Module)."""
    ks = jax.random.split(key, 12)
    Ch = C // reduction
    eps = 1e-5

    def bn_fold(kg, kb, km, kv):
        gamma = 1.0 + 0.1 * jax.random.normal(kg, (C,), jnp.float32)
        beta = 0.1 * jax.random.normal(kb, (C,), jnp.float32)
        rmean = 0.1 * jax.random.normal(km, (C,), jnp.float32)
        rvar = 1.0 + 0.1 * jnp.abs(jax.random.normal(kv, (C,), jnp.float32))
        scale = gamma / jnp.sqrt(rvar + eps)
        bias = beta - rmean * scale
        return scale, bias

    # conv weights created directly in HWIO (3,3,Cin,Cout); PyTorch stores OIHW.
    w1 = 0.1 * jax.random.normal(ks[0], (3, 3, C, C), jnp.float32)
    w2 = 0.1 * jax.random.normal(ks[1], (3, 3, C, C), jnp.float32)
    s1, b1 = bn_fold(ks[2], ks[3], ks[4], ks[5])
    s2, b2 = bn_fold(ks[6], ks[7], ks[8], ks[9])
    # SE linear weights stored pre-transposed: fc1.weight.T -> (C, Ch),
    # fc2.weight.T -> (Ch, C).
    se_w1 = 0.2 * jax.random.normal(ks[10], (C, Ch), jnp.float32)
    se_w2 = 0.2 * jax.random.normal(ks[11], (Ch, C), jnp.float32)
    return dict(w1=w1, w2=w2, s1=s1, b1=b1, s2=s2, b2=b2,
                se_w1=se_w1, se_w2=se_w2)


def reference_forward(x_nchw, params):
    """Plain-JAX reference.  Mathematically identical to conv->BN(inference)
    ->relu (the BN scale is folded into the conv weights, which is exact in
    real arithmetic), using the same bf16-weight / bf16-activation / f32-
    accumulate precision as the kernel so the comparison isolates kernel bugs
    rather than rounding-placement differences."""
    x = jnp.transpose(x_nchw, (0, 2, 3, 1)).astype(jnp.bfloat16)
    dn = ("NHWC", "HWIO", "NHWC")
    w1 = (params["w1"] * params["s1"]).astype(jnp.bfloat16)
    w2 = (params["w2"] * params["s2"]).astype(jnp.bfloat16)
    out = jax.lax.conv_general_dilated(
        x, w1, (1, 1), "SAME", dimension_numbers=dn,
        preferred_element_type=jnp.float32)
    out = jnp.maximum(out + params["b1"], 0.0)
    out = jax.lax.conv_general_dilated(
        out.astype(jnp.bfloat16), w2, (1, 1), "SAME", dimension_numbers=dn,
        preferred_element_type=jnp.float32)
    out = out + params["b2"]
    y = out.mean(axis=(1, 2))                                   # (N, C)
    h = jnp.maximum(y @ params["se_w1"], 0.0)
    gate = jax.nn.sigmoid(h @ params["se_w2"])
    out = out * gate[:, None, None, :]
    out = jnp.maximum(out + x.astype(jnp.float32), 0.0)
    return jnp.transpose(out, (0, 3, 1, 2))


if __name__ == "__main__":
    N, C, H, W = 4, 16, 16, 16      # W*C = 256 -> single-pass MXU, lane-dense
    reduction = 4                   # SELayer reduction (C // reduction = 4)

    key = jax.random.PRNGKey(0)
    kx, kp = jax.random.split(key)
    x = jax.random.normal(kx, (N, C, H, W), jnp.float32)
    params = make_params(kp, C, reduction)

    out = jax.block_until_ready(se_basic_block(x, params, images_per_step=2))
    ref = jax.block_until_ready(reference_forward(x, params))

    # bf16 matmul inputs in both kernel and reference -> compare at bf16-level
    # tolerance (accumulation is f32 in both).
    np.testing.assert_allclose(np.asarray(out), np.asarray(ref),
                               rtol=1e-2, atol=1e-2)

    print("KERNEL_OK")
</pallas_src>

<mosaic_0001>
module attributes {stable_mosaic.version = 11 : i64} {
  func.func @se_basic_block_kernel(%arg0: i32, %arg1: memref<2x16x256xbf16, #tpu.memory_space<vmem>>, %arg2: memref<768x256xbf16, #tpu.memory_space<vmem>>, %arg3: memref<1x256xf32, #tpu.memory_space<vmem>>, %arg4: memref<768x256xbf16, #tpu.memory_space<vmem>>, %arg5: memref<1x256xf32, #tpu.memory_space<vmem>>, %arg6: memref<4x256xf32, #tpu.memory_space<vmem>>, %arg7: memref<4x256xf32, #tpu.memory_space<vmem>>, %arg8: memref<2x16x256xf32, #tpu.memory_space<vmem>>, %arg9: memref<2x16x768xf32, #tpu.memory_space<vmem>>) attributes {dimension_semantics = [#tpu.dimension_semantics<parallel>], iteration_bounds = array<i64: 2>, scalar_prefetch = 0 : i64, scratch_operands = 1 : i64, tpu.core_type = #tpu.core_type<tc>, window_params = [{transform_indices = @transform_0, window_bounds = array<i64: 2, 16, 256>}, {pipeline_mode = #tpu.pipeline_mode<synchronous>, transform_indices = @transform_1, window_bounds = array<i64: 768, 256>}, {pipeline_mode = #tpu.pipeline_mode<synchronous>, transform_indices = @transform_2, window_bounds = array<i64: 1, 256>}, {pipeline_mode = #tpu.pipeline_mode<synchronous>, transform_indices = @transform_3, window_bounds = array<i64: 768, 256>}, {pipeline_mode = #tpu.pipeline_mode<synchronous>, transform_indices = @transform_4, window_bounds = array<i64: 1, 256>}, {pipeline_mode = #tpu.pipeline_mode<synchronous>, transform_indices = @transform_5, window_bounds = array<i64: 4, 256>}, {pipeline_mode = #tpu.pipeline_mode<synchronous>, transform_indices = @transform_6, window_bounds = array<i64: 4, 256>}, {transform_indices = @transform_7, window_bounds = array<i64: 2, 16, 256>}]} {
    %c0 = arith.constant 0 : index
    %c0_0 = arith.constant 0 : index
    %c0_1 = arith.constant 0 : index
    %0 = vector.load %arg1[%c0, %c0_0, %c0_1] : memref<2x16x256xbf16, #tpu.memory_space<vmem>>, vector<2x16x256xbf16>
    %1 = arith.extf %0 : vector<2x16x256xbf16> to vector<2x16x256xf32>
    %cst = arith.constant 0.000000e+00 : f32
    %2 = vector.broadcast %cst : f32 to vector<2x1x256xf32>
    %c0_2 = arith.constant 0 : index
    %c0_3 = arith.constant 0 : index
    %c256 = arith.constant 256 : index
    %3 = vector.load %arg9[%c0_2, %c0_3, %c256] : memref<2x16x768xf32, #tpu.memory_space<vmem>>, vector<2x16x256xf32>
    tpu.vector_store %arg9[%c0_2, %c0_3, %c256], %1 {strides = array<i32>} : memref<2x16x768xf32, #tpu.memory_space<vmem>>, vector<2x16x256xf32>,
    %4 = vector.extract_strided_slice %1 {offsets = [0, 0, 0], sizes = [2, 15, 256], strides = [1, 1, 1]} : vector<2x16x256xf32> to vector<2x15x256xf32>
    %c0_4 = arith.constant 0 : index
    %c1 = arith.constant 1 : index
    %c0_5 = arith.constant 0 : index
    %5 = vector.load %arg9[%c0_4, %c1, %c0_5] : memref<2x16x768xf32, #tpu.memory_space<vmem>>, vector<2x15x256xf32>
    tpu.vector_store %arg9[%c0_4, %c1, %c0_5], %4 {strides = array<i32>} : memref<2x16x768xf32, #tpu.memory_space<vmem>>, vector<2x15x256xf32>,
    %c0_6 = arith.constant 0 : index
    %c0_7 = arith.constant 0 : index
    %c0_8 = arith.constant 0 : index
    %6 = vector.load %arg9[%c0_6, %c0_7, %c0_8] : memref<2x16x768xf32, #tpu.memory_space<vmem>>, vector<2x1x256xf32>
    tpu.vector_store %arg9[%c0_6, %c0_7, %c0_8], %2 {strides = array<i32>} : memref<2x16x768xf32, #tpu.memory_space<vmem>>, vector<2x1x256xf32>,
    %7 = vector.extract_strided_slice %1 {offsets = [0, 1, 0], sizes = [2, 15, 256], strides = [1, 1, 1]} : vector<2x16x256xf32> to vector<2x15x256xf32>
    %c0_9 = arith.constant 0 : index
    %c0_10 = arith.constant 0 : index
    %c512 = arith.constant 512 : index
    %8 = vector.load %arg9[%c0_9, %c0_10, %c512] : memref<2x16x768xf32, #tpu.memory_space<vmem>>, vector<2x15x256xf32>
    tpu.vector_store %arg9[%c0_9, %c0_10, %c512], %7 {strides = array<i32>} : memref<2x16x768xf32, #tpu.memory_space<vmem>>, vector<2x15x256xf32>,
    %c0_11 = arith.constant 0 : index
    %c15 = arith.constant 15 : index
    %c512_12 = arith.constant 512 : index
    %9 = vector.load %arg9[%c0_11, %c15, %c512_12] : memref<2x16x768xf32, #tpu.memory_space<vmem>>, vector<2x1x256xf32>
    tpu.vector_store %arg9[%c0_11, %c15, %c512_12], %2 {strides = array<i32>} : memref<2x16x768xf32, #tpu.memory_space<vmem>>, vector<2x1x256xf32>,
    %c0_13 = arith.constant 0 : index
    %c0_14 = arith.constant 0 : index
    %c0_15 = arith.constant 0 : index
    %10 = vector.load %arg9[%c0_13, %c0_14, %c0_15] : memref<2x16x768xf32, #tpu.memory_space<vmem>>, vector<2x16x768xf32>
    %11 = vector.shape_cast %10 : vector<2x16x768xf32> to vector<32x768xf32>
    %12 = arith.truncf %11 : vector<32x768xf32> to vector<32x768xbf16>
    %c0_16 = arith.constant 0 : index
    %c0_17 = arith.constant 0 : index
    %13 = vector.load %arg2[%c0_16, %c0_17] : memref<768x256xbf16, #tpu.memory_space<vmem>>, vector<768x256xbf16>
    %cst_18 = arith.constant dense<0.000000e+00> : vector<32x256xf32>
    %14 = tpu.matmul %12, %13, %cst_18 {dimension_numbers = #tpu.dot_dimension_numbers<[1], [0], [0], [1], [0, 0, 1, 1], [], []>} : vector<32x768xbf16>, vector<768x256xbf16>, vector<32x256xf32> -> vector<32x256xf32>
    %c0_19 = arith.constant 0 : index
    %c0_20 = arith.constant 0 : index
    %15 = vector.load %arg3[%c0_19, %c0_20] : memref<1x256xf32, #tpu.memory_space<vmem>>, vector<1x256xf32>
    %16 = vector.broadcast %15 : vector<1x256xf32> to vector<32x256xf32>
    %17 = arith.addf %14, %16 : vector<32x256xf32>
    %cst_21 = arith.constant 0.000000e+00 : f32
    %18 = vector.broadcast %cst_21 : f32 to vector<32x256xf32>
    %19 = arith.maximumf %17, %18 : vector<32x256xf32>
    %20 = vector.shape_cast %19 : vector<32x256xf32> to vector<2x16x256xf32>
    %cst_22 = arith.constant 0.000000e+00 : f32
    %21 = vector.broadcast %cst_22 : f32 to vector<2x1x256xf32>
    %c0_23 = arith.constant 0 : index
    %c0_24 = arith.constant 0 : index
    %c256_25 = arith.constant 256 : index
    %22 = vector.load %arg9[%c0_23, %c0_24, %c256_25] : memref<2x16x768xf32, #tpu.memory_space<vmem>>, vector<2x16x256xf32>
    tpu.vector_store %arg9[%c0_23, %c0_24, %c256_25], %20 {strides = array<i32>} : memref<2x16x768xf32, #tpu.memory_space<vmem>>, vector<2x16x256xf32>,
    %23 = vector.extract_strided_slice %20 {offsets = [0, 0, 0], sizes = [2, 15, 256], strides = [1, 1, 1]} : vector<2x16x256xf32> to vector<2x15x256xf32>
    %c0_26 = arith.constant 0 : index
    %c1_27 = arith.constant 1 : index
    %c0_28 = arith.constant 0 : index
    %24 = vector.load %arg9[%c0_26, %c1_27, %c0_28] : memref<2x16x768xf32, #tpu.memory_space<vmem>>, vector<2x15x256xf32>
    tpu.vector_store %arg9[%c0_26, %c1_27, %c0_28], %23 {strides = array<i32>} : memref<2x16x768xf32, #tpu.memory_space<vmem>>, vector<2x15x256xf32>,
    %c0_29 = arith.constant 0 : index
    %c0_30 = arith.constant 0 : index
    %c0_31 = arith.constant 0 : index
    %25 = vector.load %arg9[%c0_29, %c0_30, %c0_31] : memref<2x16x768xf32, #tpu.memory_space<vmem>>, vector<2x1x256xf32>
    tpu.vector_store %arg9[%c0_29, %c0_30, %c0_31], %21 {strides = array<i32>} : memref<2x16x768xf32, #tpu.memory_space<vmem>>, vector<2x1x256xf32>,
    %26 = vector.extract_strided_slice %20 {offsets = [0, 1, 0], sizes = [2, 15, 256], strides = [1, 1, 1]} : vector<2x16x256xf32> to vector<2x15x256xf32>
    %c0_32 = arith.constant 0 : index
    %c0_33 = arith.constant 0 : index
    %c512_34 = arith.constant 512 : index
    %27 = vector.load %arg9[%c0_32, %c0_33, %c512_34] : memref<2x16x768xf32, #tpu.memory_space<vmem>>, vector<2x15x256xf32>
    tpu.vector_store %arg9[%c0_32, %c0_33, %c512_34], %26 {strides = array<i32>} : memref<2x16x768xf32, #tpu.memory_space<vmem>>, vector<2x15x256xf32>,
    %c0_35 = arith.constant 0 : index
    %c15_36 = arith.constant 15 : index
    %c512_37 = arith.constant 512 : index
    %28 = vector.load %arg9[%c0_35, %c15_36, %c512_37] : memref<2x16x768xf32, #tpu.memory_space<vmem>>, vector<2x1x256xf32>
    tpu.vector_store %arg9[%c0_35, %c15_36, %c512_37], %21 {strides = array<i32>} : memref<2x16x768xf32, #tpu.memory_space<vmem>>, vector<2x1x256xf32>,
    %c0_38 = arith.constant 0 : index
    %c0_39 = arith.constant 0 : index
    %c0_40 = arith.constant 0 : index
    %29 = vector.load %arg9[%c0_38, %c0_39, %c0_40] : memref<2x16x768xf32, #tpu.memory_space<vmem>>, vector<2x16x768xf32>
    %30 = vector.shape_cast %29 : vector<2x16x768xf32> to vector<32x768xf32>
    %31 = arith.truncf %30 : vector<32x768xf32> to vector<32x768xbf16>
    %c0_41 = arith.constant 0 : index
    %c0_42 = arith.constant 0 : index
    %32 = vector.load %arg4[%c0_41, %c0_42] : memref<768x256xbf16, #tpu.memory_space<vmem>>, vector<768x256xbf16>
    %cst_43 = arith.constant dense<0.000000e+00> : vector<32x256xf32>
    %33 = tpu.matmul %31, %32, %cst_43 {dimension_numbers = #tpu.dot_dimension_numbers<[1], [0], [0], [1], [0, 0, 1, 1], [], []>} : vector<32x768xbf16>, vector<768x256xbf16>, vector<32x256xf32> -> vector<32x256xf32>
    %c0_44 = arith.constant 0 : index
    %c0_45 = arith.constant 0 : index
    %34 = vector.load %arg5[%c0_44, %c0_45] : memref<1x256xf32, #tpu.memory_space<vmem>>, vector<1x256xf32>
    %35 = vector.broadcast %34 : vector<1x256xf32> to vector<32x256xf32>
    %36 = arith.addf %33, %35 : vector<32x256xf32>
    %37 = vector.extract_strided_slice %36 {offsets = [0, 0], sizes = [16, 256], strides = [1, 1]} : vector<32x256xf32> to vector<16x256xf32>
    %cst_46 = arith.constant dense<0.000000e+00> : vector<256xf32>
    %38 = vector.multi_reduction <add>, %37, %cst_46 [0] : vector<16x256xf32> to vector<256xf32>
    %39 = vector.shape_cast %38 : vector<256xf32> to vector<1x256xf32>
    %cst_47 = arith.constant 1.600000e+01 : f32
    %40 = vector.broadcast %cst_47 : f32 to vector<1x256xf32>
    %41 = arith.divf %39, %40 : vector<1x256xf32>
    %c0_48 = arith.constant 0 : index
    %c0_49 = arith.constant 0 : index
    %42 = vector.load %arg6[%c0_48, %c0_49] : memref<4x256xf32, #tpu.memory_space<vmem>>, vector<4x256xf32>
    %43 = vector.broadcast %41 : vector<1x256xf32> to vector<4x256xf32>
    %44 = arith.mulf %43, %42 : vector<4x256xf32>
    %cst_50 = arith.constant dense<0.000000e+00> : vector<4xf32>
    %45 = vector.multi_reduction <add>, %44, %cst_50 [1] : vector<4x256xf32> to vector<4xf32>
    %46 = vector.shape_cast %45 : vector<4xf32> to vector<4x1xf32>
    %cst_51 = arith.constant 0.000000e+00 : f32
    %47 = vector.broadcast %cst_51 : f32 to vector<4x1xf32>
    %48 = arith.maximumf %46, %47 : vector<4x1xf32>
    %c0_52 = arith.constant 0 : index
    %c0_53 = arith.constant 0 : index
    %49 = vector.load %arg7[%c0_52, %c0_53] : memref<4x256xf32, #tpu.memory_space<vmem>>, vector<4x256xf32>
    %50 = vector.broadcast %48 : vector<4x1xf32> to vector<4x256xf32>
    %51 = arith.mulf %50, %49 : vector<4x256xf32>
    %cst_54 = arith.constant dense<0.000000e+00> : vector<256xf32>
    %52 = vector.multi_reduction <add>, %51, %cst_54 [0] : vector<4x256xf32> to vector<256xf32>
    %53 = vector.shape_cast %52 : vector<256xf32> to vector<1x256xf32>
    %54 = arith.negf %53 : vector<1x256xf32>
    %55 = math.exp %54 : vector<1x256xf32>
    %cst_55 = arith.constant 1.000000e+00 : f32
    %56 = vector.broadcast %cst_55 : f32 to vector<1x256xf32>
    %57 = arith.addf %56, %55 : vector<1x256xf32>
    %58 = arith.divf %56, %57 : vector<1x256xf32>
    %59 = vector.broadcast %58 : vector<1x256xf32> to vector<16x256xf32>
    %60 = arith.mulf %37, %59 : vector<16x256xf32>
    %c0_56 = arith.constant 0 : index
    %c0_57 = arith.constant 0 : index
    %c0_58 = arith.constant 0 : index
    %61 = vector.load %arg1[%c0_56, %c0_57, %c0_58] : memref<2x16x256xbf16, #tpu.memory_space<vmem>>, vector<1x16x256xbf16>
    %62 = vector.shape_cast %61 : vector<1x16x256xbf16> to vector<16x256xbf16>
    %63 = arith.extf %62 : vector<16x256xbf16> to vector<16x256xf32>
    %64 = arith.addf %60, %63 : vector<16x256xf32>
    %cst_59 = arith.constant 0.000000e+00 : f32
    %65 = vector.broadcast %cst_59 : f32 to vector<16x256xf32>
    %66 = arith.maximumf %64, %65 : vector<16x256xf32>
    %c0_60 = arith.constant 0 : index
    %c0_61 = arith.constant 0 : index
    %c0_62 = arith.constant 0 : index
    %67 = vector.load %arg8[%c0_60, %c0_61, %c0_62] : memref<2x16x256xf32, #tpu.memory_space<vmem>>, vector<1x16x256xf32>
    %68 = vector.shape_cast %67 : vector<1x16x256xf32> to vector<16x256xf32>
    %69 = vector.shape_cast %66 : vector<16x256xf32> to vector<1x16x256xf32>
    tpu.vector_store %arg8[%c0_60, %c0_61, %c0_62], %69 {strides = array<i32>} : memref<2x16x256xf32, #tpu.memory_space<vmem>>, vector<1x16x256xf32>,
    %70 = vector.extract_strided_slice %36 {offsets = [16, 0], sizes = [16, 256], strides = [1, 1]} : vector<32x256xf32> to vector<16x256xf32>
    %cst_63 = arith.constant dense<0.000000e+00> : vector<256xf32>
    %71 = vector.multi_reduction <add>, %70, %cst_63 [0] : vector<16x256xf32> to vector<256xf32>
    %72 = vector.shape_cast %71 : vector<256xf32> to vector<1x256xf32>
    %cst_64 = arith.constant 1.600000e+01 : f32
    %73 = vector.broadcast %cst_64 : f32 to vector<1x256xf32>
    %74 = arith.divf %72, %73 : vector<1x256xf32>
    %c0_65 = arith.constant 0 : index
    %c0_66 = arith.constant 0 : index
    %75 = vector.load %arg6[%c0_65, %c0_66] : memref<4x256xf32, #tpu.memory_space<vmem>>, vector<4x256xf32>
    %76 = vector.broadcast %74 : vector<1x256xf32> to vector<4x256xf32>
    %77 = arith.mulf %76, %75 : vector<4x256xf32>
    %cst_67 = arith.constant dense<0.000000e+00> : vector<4xf32>
    %78 = vector.multi_reduction <add>, %77, %cst_67 [1] : vector<4x256xf32> to vector<4xf32>
    %79 = vector.shape_cast %78 : vector<4xf32> to vector<4x1xf32>
    %cst_68 = arith.constant 0.000000e+00 : f32
    %80 = vector.broadcast %cst_68 : f32 to vector<4x1xf32>
    %81 = arith.maximumf %79, %80 : vector<4x1xf32>
    %c0_69 = arith.constant 0 : index
    %c0_70 = arith.constant 0 : index
    %82 = vector.load %arg7[%c0_69, %c0_70] : memref<4x256xf32, #tpu.memory_space<vmem>>, vector<4x256xf32>
    %83 = vector.broadcast %81 : vector<4x1xf32> to vector<4x256xf32>
    %84 = arith.mulf %83, %82 : vector<4x256xf32>
    %cst_71 = arith.constant dense<0.000000e+00> : vector<256xf32>
    %85 = vector.multi_reduction <add>, %84, %cst_71 [0] : vector<4x256xf32> to vector<256xf32>
    %86 = vector.shape_cast %85 : vector<256xf32> to vector<1x256xf32>
    %87 = arith.negf %86 : vector<1x256xf32>
    %88 = math.exp %87 : vector<1x256xf32>
    %cst_72 = arith.constant 1.000000e+00 : f32
    %89 = vector.broadcast %cst_72 : f32 to vector<1x256xf32>
    %90 = arith.addf %89, %88 : vector<1x256xf32>
    %91 = arith.divf %89, %90 : vector<1x256xf32>
    %92 = vector.broadcast %91 : vector<1x256xf32> to vector<16x256xf32>
    %93 = arith.mulf %70, %92 : vector<16x256xf32>
    %c1_73 = arith.constant 1 : index
    %c0_74 = arith.constant 0 : index
    %c0_75 = arith.constant 0 : index
    %94 = vector.load %arg1[%c1_73, %c0_74, %c0_75] : memref<2x16x256xbf16, #tpu.memory_space<vmem>>, vector<1x16x256xbf16>
    %95 = vector.shape_cast %94 : vector<1x16x256xbf16> to vector<16x256xbf16>
    %96 = arith.extf %95 : vector<16x256xbf16> to vector<16x256xf32>
    %97 = arith.addf %93, %96 : vector<16x256xf32>
    %cst_76 = arith.constant 0.000000e+00 : f32
    %98 = vector.broadcast %cst_76 : f32 to vector<16x256xf32>
    %99 = arith.maximumf %97, %98 : vector<16x256xf32>
    %c1_77 = arith.constant 1 : index
    %c0_78 = arith.constant 0 : index
    %c0_79 = arith.constant 0 : index
    %100 = vector.load %arg8[%c1_77, %c0_78, %c0_79] : memref<2x16x256xf32, #tpu.memory_space<vmem>>, vector<1x16x256xf32>
    %101 = vector.shape_cast %100 : vector<1x16x256xf32> to vector<16x256xf32>
    %102 = vector.shape_cast %99 : vector<16x256xf32> to vector<1x16x256xf32>
    tpu.vector_store %arg8[%c1_77, %c0_78, %c0_79], %102 {strides = array<i32>} : memref<2x16x256xf32, #tpu.memory_space<vmem>>, vector<1x16x256xf32>,
    return
  }
  func.func @transform_0(%arg0: i32) -> (i32, i32, i32) {
    %c0_i32 = arith.constant 0 : i32
    %c0_i32_0 = arith.constant 0 : i32
    %c0_i32_1 = arith.constant 0 : i32
    return %arg0, %c0_i32, %c0_i32_0 : i32, i32, i32
  }
  func.func @transform_1(%arg0: i32) -> (i32, i32) {
    %c0_i32 = arith.constant 0 : i32
    %c0_i32_0 = arith.constant 0 : i32
    %c0_i32_1 = arith.constant 0 : i32
    return %c0_i32, %c0_i32_0 : i32, i32
  }
  func.func @transform_2(%arg0: i32) -> (i32, i32) {
    %c0_i32 = arith.constant 0 : i32
    %c0_i32_0 = arith.constant 0 : i32
    %c0_i32_1 = arith.constant 0 : i32
    return %c0_i32, %c0_i32_0 : i32, i32
  }
  func.func @transform_3(%arg0: i32) -> (i32, i32) {
    %c0_i32 = arith.constant 0 : i32
    %c0_i32_0 = arith.constant 0 : i32
    %c0_i32_1 = arith.constant 0 : i32
    return %c0_i32, %c0_i32_0 : i32, i32
  }
  func.func @transform_4(%arg0: i32) -> (i32, i32) {
    %c0_i32 = arith.constant 0 : i32
    %c0_i32_0 = arith.constant 0 : i32
    %c0_i32_1 = arith.constant 0 : i32
    return %c0_i32, %c0_i32_0 : i32, i32
  }
  func.func @transform_5(%arg0: i32) -> (i32, i32) {
    %c0_i32 = arith.constant 0 : i32
    %c0_i32_0 = arith.constant 0 : i32
    %c0_i32_1 = arith.constant 0 : i32
    return %c0_i32, %c0_i32_0 : i32, i32
  }
  func.func @transform_6(%arg0: i32) -> (i32, i32) {
    %c0_i32 = arith.constant 0 : i32
    %c0_i32_0 = arith.constant 0 : i32
    %c0_i32_1 = arith.constant 0 : i32
    return %c0_i32, %c0_i32_0 : i32, i32
  }
  func.func @transform_7(%arg0: i32) -> (i32, i32, i32) {
    %c0_i32 = arith.constant 0 : i32
    %c0_i32_0 = arith.constant 0 : i32
    %c0_i32_1 = arith.constant 0 : i32
    return %arg0, %c0_i32, %c0_i32_0 : i32, i32, i32
  }
}

</mosaic_0001>

<llo_original>
// kernel: tpu_custom_call.1
$region0: #{tpu_custom_call.1}
  #allocation0 [shape = 'u32[]', space=smem, size = 0x4, offset = 0x4, fixed_abs, tag = 'smem constant byte address 0x4 - core index']
  #allocation1 [shape = 'u32[144,128]{1,0:T(1,128)}', space=vmem, size = 0x12000, scoped, tag = 'internal scratch']
  #allocation2 [shape = 'f32[2,16,768]{2,1,0:T(8,128)}', space=vmem, size = 0x18000, scoped, tag = 'scratch operand']
  %s0 = inlined_call_operand.hbm [shape: bf16[4,16,256], index: 0, kind: input, shape index: {}]
  %s1 = inlined_call_operand.hbm [shape: bf16[768,256], index: 1, kind: input, shape index: {}]
  %s2 = inlined_call_operand.vmem [shape: f32[1,256], index: 2, kind: input, shape index: {}]
  %s3 = inlined_call_operand.hbm [shape: bf16[768,256], index: 3, kind: input, shape index: {}]
  %s4 = inlined_call_operand.hbm [shape: f32[1,256], index: 4, kind: input, shape index: {}]
  %s5 = inlined_call_operand.vmem [shape: f32[4,256], index: 5, kind: input, shape index: {}]
  %s6 = inlined_call_operand.vmem [shape: f32[4,256], index: 6, kind: input, shape index: {}]
  %s7 = inlined_call_operand.hbm [shape: f32[4,16,256], index: 7, kind: output, shape index: {}]
  %s8 = sld [smem:[#allocation0]]
  $region77: #{tpu_custom_call.1} parent=0
    _
  %s10 = ssub.s32 1, %s8
  %s11 = scalar_select 0, %s10, %s8
  $region1: #{tpu_custom_call.1} parent=0
    #allocation3 [shape = 'u8[32768]{0}', space=vmem, size = 0x8000, scoped, tag = 'input window, operand 0']
    #allocation4 [shape = 's32[2]{0}', space=sflag, size = 0x8, scoped, tag = 'scoped memory for tpu_custom_call.1']
    #allocation5 [shape = 's32[2]{0}', space=sflag, size = 0x8, scoped, tag = 'scoped memory for tpu_custom_call.1']
    #allocation6 [shape = 'u8[393216]{0}', space=vmem, size = 0x60000, scoped, tag = 'input window, operand 1, single buffered']
    #allocation7 [shape = 's32[1]{0}', space=sflag, size = 0x4, scoped, tag = 'scoped memory for tpu_custom_call.1']
    #allocation8 [shape = 'u8[393216]{0}', space=vmem, size = 0x60000, scoped, tag = 'input window, operand 3, single buffered']
    #allocation9 [shape = 'u8[1024]{0}', space=vmem, size = 0x400, scoped, tag = 'input window, operand 4, single buffered']
    #allocation10 [shape = 's32[1]{0}', space=sflag, size = 0x4, scoped, tag = 'scoped memory for tpu_custom_call.1']
    #allocation11 [shape = 'u8[65536]{0}', space=vmem, size = 0x10000, scoped, tag = 'output window, operand 0']
    %12 = vsyncpa [#allocation4], 0
    %s13 = scalar_lea.sflag [#allocation4], 1
    %14 = vsyncpa %s13, 0
    %15 = vsyncpa [#allocation7], 0
    %16 = vsyncpa [#allocation10], 0
    %17 = vsyncpa [#allocation5], 0
    %s18 = scalar_lea.sflag [#allocation5], 1
    %19 = vsyncpa %s18, 0
    loop: start=0, step=1, limit=4
    $region2: #{tpu_custom_call.1} parent=1 // loop_pre_header
      _
    $region3: #{tpu_custom_call.1} parent=1 // loop_header
      %s21 = sphi 0, %s25
      %p22 = scmp.ge.s32.totalorder %s21, 4
      %s31 = sphi 0, %s33
      %s34 = sphi 0, %s31
      %s35 = sphi 0, %s34
      %s51 = sphi 0, %s35
      %s55 = sphi 0, %s55
      %s57 = sphi 0, %s55
      %s58 = sphi 0, %s57
      %s72 = sphi 0, %s58
      %s76 = sphi 0, %s76
      %s78 = sphi 0, %s76
      %s79 = sphi 0, %s78
      %s93 = sphi 0, %s79
      %s97 = sphi 0, %s97
      %s99 = sphi 0, %s97
      %s100 = sphi 0, %s99
      %s114 = sphi 0, %s100
      %s118 = sphi 0, %s118
      %s120 = sphi 0, %s118
      %s121 = sphi 0, %s120
      %s135 = sphi 0, %s121
      %s139 = sphi 0, %s139
      %s141 = sphi 0, %s139
      %s142 = sphi 0, %s141
      %s156 = sphi 0, %s142
      %s160 = sphi 0, %s160
      %s162 = sphi 0, %s160
      %s163 = sphi 0, %s162
      %s177 = sphi 0, %s163
      %s183 = sphi 0, %s185
      %s186 = sphi 0, %s183
      %s187 = sphi 0, %s186
      %s203 = sphi 0, %s187
    $region4: #{tpu_custom_call.1} parent=1 // loop_header_branch
      %24 = sbr.rel (%p22) target = $region8
    $region5: #{tpu_custom_call.1} parent=1 // loop_body
      %s26 = ssub.s32 %s21, 1
      %s27 = ssub.s32 %s21, 2
      %s28 = sadd.s32 %s21, 1
      %s29 = ssub.s32 %s21, %s28
      %p30 = scmp.eq.s32.totalorder %s29, 0
      %s32 = sadd.s32 %s31, 1
      %s33 = scalar_select %p30, %s31, %s32
      %p36 = pneg %p30
      %p37 = scmp.eq.s32.totalorder %s21, 1
      %p38 = por %p36, %p37
      %p39 = scmp.ne.s32.totalorder %s31, %s34
      %p40 = scmp.eq.s32.totalorder %s21, 0
      %p41 = por %p39, %p40
      %p42 = scmp.ne.s32.totalorder %s31, %s34
      %p43 = scmp.eq.s32.totalorder %s26, 1
      %p44 = por %p42, %p43
      %p45 = scmp.ne.s32.totalorder %s34, %s35
      %p46 = scmp.eq.s32.totalorder %s26, 0
      %p47 = por %p45, %p46
      %p48 = scmp.ne.s32.totalorder %s34, %s35
      %p49 = scmp.eq.s32.totalorder %s27, 1
      %p50 = por %p48, %p49
      %p52 = scmp.ne.s32.totalorder %s35, %s51
      %p53 = scmp.eq.s32.totalorder %s27, 0
      %p54 = por %p52, %p53
      %s56 = sadd.s32 %s55, 1
      %p59 = scmp.eq.s32.totalorder %s21, 1
      %p60 = scmp.ne.s32.totalorder %s55, %s57
      %p61 = scmp.eq.s32.totalorder %s21, 0
      %p62 = por %p60, %p61
      %p63 = scmp.ne.s32.totalorder %s55, %s57
      %p64 = scmp.eq.s32.totalorder %s26, 1
      %p65 = por %p63, %p64
      %p66 = scmp.ne.s32.totalorder %s57, %s58
      %p67 = scmp.eq.s32.totalorder %s26, 0
      %p68 = por %p66, %p67
      %p69 = scmp.ne.s32.totalorder %s57, %s58
      %p70 = scmp.eq.s32.totalorder %s27, 1
      %p71 = por %p69, %p70
      %p73 = scmp.ne.s32.totalorder %s58, %s72
      %p74 = scmp.eq.s32.totalorder %s27, 0
      %p75 = por %p73, %p74
      %s77 = sadd.s32 %s76, 1
      %p80 = scmp.eq.s32.totalorder %s21, 1
      %p81 = scmp.ne.s32.totalorder %s76, %s78
      %p82 = scmp.eq.s32.totalorder %s21, 0
      %p83 = por %p81, %p82
      %p84 = scmp.ne.s32.totalorder %s76, %s78
      %p85 = scmp.eq.s32.totalorder %s26, 1
      %p86 = por %p84, %p85
      %p87 = scmp.ne.s32.totalorder %s78, %s79
      %p88 = scmp.eq.s32.totalorder %s26, 0
      %p89 = por %p87, %p88
      %p90 = scmp.ne.s32.totalorder %s78, %s79
      %p91 = scmp.eq.s32.totalorder %s27, 1
      %p92 = por %p90, %p91
      %p94 = scmp.ne.s32.totalorder %s79, %s93
      %p95 = scmp.eq.s32.totalorder %s27, 0
      %p96 = por %p94, %p95
      %s98 = sadd.s32 %s97, 1
      %p101 = scmp.eq.s32.totalorder %s21, 1
      %p102 = scmp.ne.s32.totalorder %s97, %s99
      %p103 = scmp.eq.s32.totalorder %s21, 0
      %p104 = por %p102, %p103
      %p105 = scmp.ne.s32.totalorder %s97, %s99
      %p106 = scmp.eq.s32.totalorder %s26, 1
      %p107 = por %p105, %p106
      %p108 = scmp.ne.s32.totalorder %s99, %s100
      %p109 = scmp.eq.s32.totalorder %s26, 0
      %p110 = por %p108, %p109
      %p111 = scmp.ne.s32.totalorder %s99, %s100
      %p112 = scmp.eq.s32.totalorder %s27, 1
      %p113 = por %p111, %p112
      %p115 = scmp.ne.s32.totalorder %s100, %s114
      %p116 = scmp.eq.s32.totalorder %s27, 0
      %p117 = por %p115, %p116
      %s119 = sadd.s32 %s118, 1
      %p122 = scmp.eq.s32.totalorder %s21, 1
      %p123 = scmp.ne.s32.totalorder %s118, %s120
      %p124 = scmp.eq.s32.totalorder %s21, 0
      %p125 = por %p123, %p124
      %p126 = scmp.ne.s32.totalorder %s118, %s120
      %p127 = scmp.eq.s32.totalorder %s26, 1
      %p128 = por %p126, %p127
      %p129 = scmp.ne.s32.totalorder %s120, %s121
      %p130 = scmp.eq.s32.totalorder %s26, 0
      %p131 = por %p129, %p130
      %p132 = scmp.ne.s32.totalorder %s120, %s121
      %p133 = scmp.eq.s32.totalorder %s27, 1
      %p134 = por %p132, %p133
      %p136 = scmp.ne.s32.totalorder %s121, %s135
      %p137 = scmp.eq.s32.totalorder %s27, 0
      %p138 = por %p136, %p137
      %s140 = sadd.s32 %s139, 1
      %p143 = scmp.eq.s32.totalorder %s21, 1
      %p144 = scmp.ne.s32.totalorder %s139, %s141
      %p145 = scmp.eq.s32.totalorder %s21, 0
      %p146 = por %p144, %p145
      %p147 = scmp.ne.s32.totalorder %s139, %s141
      %p148 = scmp.eq.s32.totalorder %s26, 1
      %p149 = por %p147, %p148
      %p150 = scmp.ne.s32.totalorder %s141, %s142
      %p151 = scmp.eq.s32.totalorder %s26, 0
      %p152 = por %p150, %p151
      %p153 = scmp.ne.s32.totalorder %s141, %s142
      %p154 = scmp.eq.s32.totalorder %s27, 1
      %p155 = por %p153, %p154
      %p157 = scmp.ne.s32.totalorder %s142, %s156
      %p158 = scmp.eq.s32.totalorder %s27, 0
      %p159 = por %p157, %p158
      %s161 = sadd.s32 %s160, 1
      %p164 = scmp.eq.s32.totalorder %s21, 1
      %p165 = scmp.ne.s32.totalorder %s160, %s162
      %p166 = scmp.eq.s32.totalorder %s21, 0
      %p167 = por %p165, %p166
      %p168 = scmp.ne.s32.totalorder %s160, %s162
      %p169 = scmp.eq.s32.totalorder %s26, 1
      %p170 = por %p168, %p169
      %p171 = scmp.ne.s32.totalorder %s162, %s163
      %p172 = scmp.eq.s32.totalorder %s26, 0
      %p173 = por %p171, %p172
      %p174 = scmp.ne.s32.totalorder %s162, %s163
      %p175 = scmp.eq.s32.totalorder %s27, 1
      %p176 = por %p174, %p175
      %p178 = scmp.ne.s32.totalorder %s163, %s177
      %p179 = scmp.eq.s32.totalorder %s27, 0
      %p180 = por %p178, %p179
      %s181 = ssub.s32 %s21, %s28
      %p182 = scmp.eq.s32.totalorder %s181, 0
      %s184 = sadd.s32 %s183, 1
      %s185 = scalar_select %p182, %s183, %s184
      %p188 = pneg %p182
      %p189 = scmp.eq.s32.totalorder %s21, 1
      %p190 = por %p188, %p189
      %p191 = scmp.ne.s32.totalorder %s183, %s186
      %p192 = scmp.eq.s32.totalorder %s21, 0
      %p193 = por %p191, %p192
      %p194 = scmp.ne.s32.totalorder %s183, %s186
      %p195 = scmp.eq.s32.totalorder %s26, 1
      %p196 = por %p194, %p195
      %p197 = scmp.ne.s32.totalorder %s186, %s187
      %p198 = scmp.eq.s32.totalorder %s26, 0
      %p199 = por %p197, %p198
      %p200 = scmp.ne.s32.totalorder %s186, %s187
      %p201 = scmp.eq.s32.totalorder %s27, 1
      %p202 = por %p200, %p201
      %p204 = scmp.ne.s32.totalorder %s187, %s203
      %p205 = scmp.eq.s32.totalorder %s27, 0
      %p206 = por %p204, %p205
      %p207 = scmp.le.s32.totalorder 1, %s21
      %p208 = scmp.lt.s32.totalorder %s21, 3
      %p209 = pnand %p207, %p208
      %p210 = pneg %p209
      // Predicated region
      $region9: #{tpu_custom_call.1} parent=5 // pred_check
        _
      $region10: #{tpu_custom_call.1} parent=5 // pred_check_branch
        %212 = sbr.rel (%p209) target = $region12
      $region11: #{tpu_custom_call.1} parent=5 // pred_region
        %s213 = ssub.s32 %s21, 1
        // Predicated region
        $region13: #{tpu_custom_call.1} parent=11 // pred_check
          %p214 = pneg %p68
        $region14: #{tpu_custom_call.1} parent=11 // pred_check_branch
          %216 = sbr.rel (%p214) target = $region16
        $region15: #{tpu_custom_call.1} parent=11 // pred_region
          %s218 = ssub.s32 12288, 12288
          %219 = vsyncadd [#allocation7], %s218
          %s220 = sshll.u32 [#allocation6], 4
          %s221 = int_to_ptr.vmem [resolvable:$true] %s220
          %226 = dma.hbm_to_vmem [thread:$0]  %s1, 12288, %s221, [#allocation7], 128, 128, 8
        $region16: #{tpu_custom_call.1} parent=11 // pred_fallthru
          _
        // Predicated region
        $region17: #{tpu_custom_call.1} parent=11 // pred_check
          %p227 = pneg %p89
        $region18: #{tpu_custom_call.1} parent=11 // pred_check_branch
          %229 = sbr.rel (%p227) target = $region20
        $region19: #{tpu_custom_call.1} parent=11 // pred_region
          _
        $region20: #{tpu_custom_call.1} parent=11 // pred_fallthru
          _
        // Predicated region
        $region21: #{tpu_custom_call.1} parent=11 // pred_check
          %p230 = pneg %p110
        $region22: #{tpu_custom_call.1} parent=11 // pred_check_branch
          %232 = sbr.rel (%p230) target = $region24
        $region23: #{tpu_custom_call.1} parent=11 // pred_region
          %s234 = ssub.s32 12288, 12288
          %235 = vsyncadd [#allocation7], %s234
          %s236 = sshll.u32 [#allocation8], 4
          %s237 = int_to_ptr.vmem [resolvable:$true] %s236
          %242 = dma.hbm_to_vmem [thread:$0]  %s3, 12288, %s237, [#allocation7], 128, 128, 8
        $region24: #{tpu_custom_call.1} parent=11 // pred_fallthru
          _
        // Predicated region
        $region25: #{tpu_custom_call.1} parent=11 // pred_check
          %p243 = pneg %p131
        $region26: #{tpu_custom_call.1} parent=11 // pred_check_branch
          %245 = sbr.rel (%p243) target = $region28
        $region27: #{tpu_custom_call.1} parent=11 // pred_region
          %s247 = ssub.s32 32, 32
          %248 = vsyncadd [#allocation10], %s247
          %s250 = sshll.u32 [#allocation9], 4
          %s251 = int_to_ptr.vmem [resolvable:$true] %s250
          %253 = dma.hbm_to_vmem [thread:$0]  %s4, 32, %s251, [#allocation10]
        $region28: #{tpu_custom_call.1} parent=11 // pred_fallthru
          _
        // Predicated region
        $region29: #{tpu_custom_call.1} parent=11 // pred_check
          %p254 = pneg %p152
        $region30: #{tpu_custom_call.1} parent=11 // pred_check_branch
          %256 = sbr.rel (%p254) target = $region32
        $region31: #{tpu_custom_call.1} parent=11 // pred_region
          _
        $region32: #{tpu_custom_call.1} parent=11 // pred_fallthru
          _
        // Predicated region
        $region33: #{tpu_custom_call.1} parent=11 // pred_check
          %p257 = pneg %p173
        $region34: #{tpu_custom_call.1} parent=11 // pred_check_branch
          %259 = sbr.rel (%p257) target = $region36
        $region35: #{tpu_custom_call.1} parent=11 // pred_region
          _
        $region36: #{tpu_custom_call.1} parent=11 // pred_fallthru
          _
      $region12: #{tpu_custom_call.1} parent=5 // pred_fallthru
        _
      %p260 = scmp.lt.s32.totalorder %s21, 2
      // Predicated region
      $region37: #{tpu_custom_call.1} parent=5 // pred_check
        %p261 = pneg %p260
      $region38: #{tpu_custom_call.1} parent=5 // pred_check_branch
        %263 = sbr.rel (%p261) target = $region40
      $region39: #{tpu_custom_call.1} parent=5 // pred_region
        // Predicated region
        $region41: #{tpu_custom_call.1} parent=39 // pred_check
          %p264 = pneg %p41
        $region42: #{tpu_custom_call.1} parent=39 // pred_check_branch
          %266 = sbr.rel (%p264) target = $region44
        $region43: #{tpu_custom_call.1} parent=39 // pred_region
          %s267 = sand.u32 %s31, 1
          %s268 = scalar_lea.sflag [#allocation4], %s267
          %s269 = sand.u32 %s31, 1
          %s270 = smul.addr %s269, 32
          %s271 = scalar_lea.vmem [#allocation3], %s270
          %s272 = smul.u32 2, %s21
          %s274 = ssub.s32 512, 512
          %275 = vsyncadd %s268, %s274
          %s276 = smul.addr %s272, 4
          %s277 = smul.addr %s276, 64
          %s278 = scalar_lea.hbm %s0, %s277
          %s279 = sshll.u32 %s271, 4
          %s280 = int_to_ptr.vmem [resolvable:$true] %s279
          %285 = dma.hbm_to_vmem [thread:$0]  %s278, 512, %s280, %s268, 128, 128, 8
        $region44: #{tpu_custom_call.1} parent=39 // pred_fallthru
          _
      $region40: #{tpu_custom_call.1} parent=5 // pred_fallthru
        _
      %p286 = scmp.le.s32.totalorder 1, %s21
      %p287 = scmp.lt.s32.totalorder %s21, 3
      %p288 = pnand %p286, %p287
      %p289 = pneg %p288
      // Predicated region
      $region45: #{tpu_custom_call.1} parent=5 // pred_check
        _
      $region46: #{tpu_custom_call.1} parent=5 // pred_check_branch
        %291 = sbr.rel (%p288) target = $region48
      $region47: #{tpu_custom_call.1} parent=5 // pred_region
        %s292 = ssub.s32 %s21, 1
        %s293 = sand.u32 %s34, 1
        %s294 = scalar_lea.sflag [#allocation4], %s293
        %s295 = sand.u32 %s34, 1
        %s296 = smul.addr %s295, 32
        %s297 = scalar_lea.vmem [#allocation3], %s296
        // Predicated region
        $region49: #{tpu_custom_call.1} parent=47 // pred_check
          %p298 = pneg %p47
        $region50: #{tpu_custom_call.1} parent=47 // pred_check_branch
          %300 = sbr.rel (%p298) target = $region52
        $region51: #{tpu_custom_call.1} parent=47 // pred_region
          %301 = dma.done %s294, 512
        $region52: #{tpu_custom_call.1} parent=47 // pred_fallthru
          _
        // Predicated region
        $region53: #{tpu_custom_call.1} parent=47 // pred_check
          %p302 = pneg %p68
        $region54: #{tpu_custom_call.1} parent=47 // pred_check_branch
          %304 = sbr.rel (%p302) target = $region56
        $region55: #{tpu_custom_call.1} parent=47 // pred_region
          %305 = dma.done [#allocation7], 12288
        $region56: #{tpu_custom_call.1} parent=47 // pred_fallthru
          _
        // Predicated region
        $region57: #{tpu_custom_call.1} parent=47 // pred_check
          %p306 = pneg %p110
        $region58: #{tpu_custom_call.1} parent=47 // pred_check_branch
          %308 = sbr.rel (%p306) target = $region60
        $region59: #{tpu_custom_call.1} parent=47 // pred_region
          %309 = dma.done [#allocation7], 12288
        $region60: #{tpu_custom_call.1} parent=47 // pred_fallthru
          _
        // Predicated region
        $region61: #{tpu_custom_call.1} parent=47 // pred_check
          %p310 = pneg %p131
        $region62: #{tpu_custom_call.1} parent=47 // pred_check_branch
          %312 = sbr.rel (%p310) target = $region64
        $region63: #{tpu_custom_call.1} parent=47 // pred_region
          %313 = dma.done [#allocation10], 32
        $region64: #{tpu_custom_call.1} parent=47 // pred_fallthru
          _
        %s314 = sand.u32 %s34, 1
        %s315 = scalar_lea.sflag [#allocation4], %s314
        %s316 = sand.u32 %s34, 1
        %s317 = smul.addr %s316, 32
        %s318 = scalar_lea.vmem [#allocation3], %s317
        %p319 = pneg %p47
        %p320 = pneg %p44
        %p321 = pneg %p68
        %p322 = pneg %p65
        %p323 = pneg %p89
        %p324 = pneg %p86
        %p325 = pneg %p110
        %p326 = pneg %p107
        %p327 = pneg %p131
        %p328 = pneg %p128
        %p329 = pneg %p152
        %p330 = pneg %p149
        %p331 = pneg %p173
        %p332 = pneg %p170
        %p333 = pneg %p199
        %p334 = pneg %p196
        %s335 = sand.u32 %s186, 1
        %s336 = scalar_lea.sflag [#allocation5], %s335
        %s337 = sand.u32 %s186, 1
        %s338 = smul.addr %s337, 64
        %s339 = scalar_lea.vmem [#allocation11], %s338
        %s340 = smul.u32 2, %s26
        %s341 = smul.u32 2, %s26
        %v342 = vld [vmem:[%s297] sm:$0xff]
        %v343 = vld [vmem:[%s297 + $0x8] sm:$0xff]
        %v344 = vld [vmem:[%s297 + $0x10] sm:$0xff]
        %v345 = vld [vmem:[%s297 + $0x18] sm:$0xff]
        %v346 = vunpack.c.l.bf16 %v342
        %v347 = vunpack.c.h.bf16 %v342
        %v348 = vunpack.c.l.bf16 %v343
        %v349 = vunpack.c.h.bf16 %v343
        %v350 = vunpack.c.l.bf16 %v344
        %v351 = vunpack.c.h.bf16 %v344
        %v352 = vunpack.c.l.bf16 %v345
        %v353 = vunpack.c.h.bf16 %v345
        %354 = vst [vmem:[#allocation2 + $0x10] sm:$0xff] %v346
        %355 = vst [vmem:[#allocation2 + $0x18] sm:$0xff] %v347
        %356 = vst [vmem:[#allocation2 + $0x40] sm:$0xff] %v348
        %357 = vst [vmem:[#allocation2 + $0x48] sm:$0xff] %v349
        %358 = vst [vmem:[#allocation2 + $0x70] sm:$0xff] %v350
        %359 = vst [vmem:[#allocation2 + $0x78] sm:$0xff] %v351
        %360 = vst [vmem:[#allocation2 + $0xa0] sm:$0xff] %v352
        %361 = vst [vmem:[#allocation2 + $0xa8] sm:$0xff] %v353
        %vm370 = vcmask 1040384
        %v371 = vrot.slane %v346, 7
        %v372 = vrot.slane %v347, 7
        %v373 = vrot.slane %v348, 7
        %v374 = vsel %vm370, %v371, %v373
        %v375 = vrot.slane %v349, 7
        %v376 = vsel %vm370, %v372, %v375
        %v377 = vrot.slane %v350, 7
        %v378 = vrot.slane %v351, 7
        %v379 = vrot.slane %v352, 7
        %v380 = vsel %vm370, %v377, %v379
        %v381 = vrot.slane %v353, 7
        %v382 = vsel %vm370, %v378, %v381
        %391 = vst [vmem:[#allocation2] sm:$0xfe] %v371
        %392 = vst [vmem:[#allocation2 + $0x8] sm:$0xfe] %v372
        %393 = vst [vmem:[#allocation2 + $0x30] sm:$0xff] %v374
        %394 = vst [vmem:[#allocation2 + $0x38] sm:$0xff] %v376
        %395 = vst [vmem:[#allocation2 + $0x60] sm:$0xfe] %v377
        %396 = vst [vmem:[#allocation2 + $0x68] sm:$0xfe] %v378
        %397 = vst [vmem:[#allocation2 + $0x90] sm:$0xff] %v380
        %398 = vst [vmem:[#allocation2 + $0x98] sm:$0xff] %v382
        %v399 = vlaneseq
        %vm400 = vcmp.ge.s32.totalorder %v399, 0
        %vm401 = vcmp.lt.s32.totalorder %v399, 256
        %vm402 = vmand %vm400, %vm401
        %403 = vst.msk [vmem:[#allocation2] ss:$8 sm:$0x3] %vm402, 0.0
        %404 = vst.msk [vmem:[#allocation2] ss:$8 sm:$0x0] %vm402, 0.0
        %s405 = scalar_lea.vmem [#allocation2], 96
        %406 = vst.msk [vmem:[%s405] ss:$8 sm:$0x3] %vm402, 0.0
        %407 = vst.msk [vmem:[%s405] ss:$8 sm:$0x0] %vm402, 0.0
        %vm408 = vcmask 1046528
        %v409 = vrot.slane %v346, 1
        %v410 = vrot.slane %v348, 1
        %v411 = vsel %vm408, %v409, %v410
        %v412 = vrot.slane %v347, 1
        %v413 = vrot.slane %v349, 1
        %v414 = vsel %vm408, %v412, %v413
        %v415 = vrot.slane %v350, 1
        %v416 = vrot.slane %v352, 1
        %v417 = vsel %vm408, %v415, %v416
        %v418 = vrot.slane %v351, 1
        %v419 = vrot.slane %v353, 1
        %v420 = vsel %vm408, %v418, %v419
        %429 = vst [vmem:[#allocation2 + $0x20] sm:$0xff] %v411
        %430 = vst [vmem:[#allocation2 + $0x28] sm:$0xff] %v414
        %431 = vst [vmem:[#allocation2 + $0x50] sm:$0x7f] %v410
        %432 = vst [vmem:[#allocation2 + $0x58] sm:$0x7f] %v413
        %433 = vst [vmem:[#allocation2 + $0x80] sm:$0xff] %v417
        %434 = vst [vmem:[#allocation2 + $0x88] sm:$0xff] %v420
        %435 = vst [vmem:[#allocation2 + $0xb0] sm:$0x7f] %v416
        %436 = vst [vmem:[#allocation2 + $0xb8] sm:$0x7f] %v419
        %s437 = scalar_lea.vmem [#allocation2], 87
        %438 = vst.msk [vmem:[%s437] ss:$8 sm:$0x3] %vm402, 0.0
        %439 = vst.msk [vmem:[%s437] ss:$8 sm:$0x0] %vm402, 0.0
        %s440 = scalar_lea.vmem [#allocation2], 183
        %441 = vst.msk [vmem:[%s440] ss:$8 sm:$0x3] %vm402, 0.0
        %442 = vst.msk [vmem:[%s440] ss:$8 sm:$0x0] %vm402, 0.0
        %v443 = vld [vmem:[#allocation2] sm:$0xff]
        %v444 = vld [vmem:[#allocation2 + $0x8] sm:$0xff]
        %v445 = vld [vmem:[#allocation2 + $0x10] sm:$0xff]
        %v446 = vld [vmem:[#allocation2 + $0x18] sm:$0xff]
        %v447 = vld [vmem:[#allocation2 + $0x20] sm:$0xff]
        %v448 = vld [vmem:[#allocation2 + $0x28] sm:$0xff]
        %v449 = vld [vmem:[#allocation2 + $0x30] sm:$0xff]
        %v450 = vld [vmem:[#allocation2 + $0x38] sm:$0xff]
        %v451 = vld [vmem:[#allocation2 + $0x40] sm:$0xff]
        %v452 = vld [vmem:[#allocation2 + $0x48] sm:$0xff]
        %v453 = vld [vmem:[#allocation2 + $0x50] sm:$0xff]
        %v454 = vld [vmem:[#allocation2 + $0x58] sm:$0xff]
        %v455 = vld [vmem:[#allocation2 + $0x60] sm:$0xff]
        %v456 = vld [vmem:[#allocation2 + $0x68] sm:$0xff]
        %v457 = vld [vmem:[#allocation2 + $0x70] sm:$0xff]
        %v458 = vld [vmem:[#allocation2 + $0x78] sm:$0xff]
        %v459 = vld [vmem:[#allocation2 + $0x80] sm:$0xff]
        %v460 = vld [vmem:[#allocation2 + $0x88] sm:$0xff]
        %v461 = vld [vmem:[#allocation2 + $0x90] sm:$0xff]
        %v462 = vld [vmem:[#allocation2 + $0x98] sm:$0xff]
        %v463 = vld [vmem:[#allocation2 + $0xa0] sm:$0xff]
        %v464 = vld [vmem:[#allocation2 + $0xa8] sm:$0xff]
        %v465 = vld [vmem:[#allocation2 + $0xb0] sm:$0xff]
        %v466 = vld [vmem:[#allocation2 + $0xb8] sm:$0xff]
        %v467 = vpack.c.bf16 %v449, %v443
        %v468 = vpack.c.bf16 %v450, %v444
        %v469 = vpack.c.bf16 %v451, %v445
        %v470 = vpack.c.bf16 %v452, %v446
        %v471 = vpack.c.bf16 %v453, %v447
        %v472 = vpack.c.bf16 %v454, %v448
        %v473 = vpack.c.bf16 %v461, %v455
        %v474 = vpack.c.bf16 %v462, %v456
        %v475 = vpack.c.bf16 %v463, %v457
        %v476 = vpack.c.bf16 %v464, %v458
        %v477 = vpack.c.bf16 %v465, %v459
        %v478 = vpack.c.bf16 %v466, %v460
        %v479 = vld [vmem:[#allocation6] sm:$0xff]
        %v480 = vld [vmem:[#allocation6 + $0x8] sm:$0xff]
        %v481 = vld [vmem:[#allocation6 + $0x10] sm:$0xff]
        %v482 = vld [vmem:[#allocation6 + $0x18] sm:$0xff]
        %v483 = vld [vmem:[#allocation6 + $0x20] sm:$0xff]
        %v484 = vld [vmem:[#allocation6 + $0x28] sm:$0xff]
        %v485 = vld [vmem:[#allocation6 + $0x30] sm:$0xff]
        %v486 = vld [vmem:[#allocation6 + $0x38] sm:$0xff]
        %v487 = vld [vmem:[#allocation6 + $0x40] sm:$0xff]
        %v488 = vld [vmem:[#allocation6 + $0x48] sm:$0xff]
        %v489 = vld [vmem:[#allocation6 + $0x50] sm:$0xff]
        %v490 = vld [vmem:[#allocation6 + $0x58] sm:$0xff]
        %v491 = vld [vmem:[#allocation6 + $0x60] sm:$0xff]
        %v492 = vld [vmem:[#allocation6 + $0x68] sm:$0xff]
        %v493 = vld [vmem:[#allocation6 + $0x70] sm:$0xff]
        %v494 = vld [vmem:[#allocation6 + $0x78] sm:$0xff]
        %v495 = vld [vmem:[#allocation6 + $0x80] sm:$0xff]
        %v496 = vld [vmem:[#allocation6 + $0x88] sm:$0xff]
        %v497 = vld [vmem:[#allocation6 + $0x90] sm:$0xff]
        %v498 = vld [vmem:[#allocation6 + $0x98] sm:$0xff]
        %v499 = vld [vmem:[#allocation6 + $0xa0] sm:$0xff]
        %v500 = vld [vmem:[#allocation6 + $0xa8] sm:$0xff]
        %v501 = vld [vmem:[#allocation6 + $0xb0] sm:$0xff]
        %v502 = vld [vmem:[#allocation6 + $0xb8] sm:$0xff]
        %v503 = vld [vmem:[#allocation6 + $0xc0] sm:$0xff]
        %v504 = vld [vmem:[#allocation6 + $0xc8] sm:$0xff]
        %v505 = vld [vmem:[#allocation6 + $0xd0] sm:$0xff]
        %v506 = vld [vmem:[#allocation6 + $0xd8] sm:$0xff]
        %v507 = vld [vmem:[#allocation6 + $0xe0] sm:$0xff]
        %v508 = vld [vmem:[#allocation6 + $0xe8] sm:$0xff]
        %v509 = vld [vmem:[#allocation6 + $0xf0] sm:$0xff]
        %v510 = vld [vmem:[#allocation6 + $0xf8] sm:$0xff]
        %v511 = vld [vmem:[#allocation6 + $0x100] sm:$0xff]
        %v512 = vld [vmem:[#allocation6 + $0x108] sm:$0xff]
        %v513 = vld [vmem:[#allocation6 + $0x110] sm:$0xff]
        %v514 = vld [vmem:[#allocation6 + $0x118] sm:$0xff]
        %v515 = vld [vmem:[#allocation6 + $0x120] sm:$0xff]
        %v516 = vld [vmem:[#allocation6 + $0x128] sm:$0xff]
        %v517 = vld [vmem:[#allocation6 + $0x130] sm:$0xff]
        %v518 = vld [vmem:[#allocation6 + $0x138] sm:$0xff]
        %v519 = vld [vmem:[#allocation6 + $0x140] sm:$0xff]
        %v520 = vld [vmem:[#allocation6 + $0x148] sm:$0xff]
        %v521 = vld [vmem:[#allocation6 + $0x150] sm:$0xff]
        %v522 = vld [vmem:[#allocation6 + $0x158] sm:$0xff]
        %v523 = vld [vmem:[#allocation6 + $0x160] sm:$0xff]
        %v524 = vld [vmem:[#allocation6 + $0x168] sm:$0xff]
        %v525 = vld [vmem:[#allocation6 + $0x170] sm:$0xff]
        %v526 = vld [vmem:[#allocation6 + $0x178] sm:$0xff]
        %v527 = vld [vmem:[#allocation6 + $0x180] sm:$0xff]
        %v528 = vld [vmem:[#allocation6 + $0x188] sm:$0xff]
        %v529 = vld [vmem:[#allocation6 + $0x190] sm:$0xff]
        %v530 = vld [vmem:[#allocation6 + $0x198] sm:$0xff]
        %v531 = vld [vmem:[#allocation6 + $0x1a0] sm:$0xff]
        %v532 = vld [vmem:[#allocation6 + $0x1a8] sm:$0xff]
        %v533 = vld [vmem:[#allocation6 + $0x1b0] sm:$0xff]
        %v534 = vld [vmem:[#allocation6 + $0x1b8] sm:$0xff]
        %v535 = vld [vmem:[#allocation6 + $0x1c0] sm:$0xff]
        %v536 = vld [vmem:[#allocation6 + $0x1c8] sm:$0xff]
        %v537 = vld [vmem:[#allocation6 + $0x1d0] sm:$0xff]
        %v538 = vld [vmem:[#allocation6 + $0x1d8] sm:$0xff]
        %v539 = vld [vmem:[#allocation6 + $0x1e0] sm:$0xff]
        %v540 = vld [vmem:[#allocation6 + $0x1e8] sm:$0xff]
        %v541 = vld [vmem:[#allocation6 + $0x1f0] sm:$0xff]
        %v542 = vld [vmem:[#allocation6 + $0x1f8] sm:$0xff]
        %v543 = vld [vmem:[#allocation6 + $0x200] sm:$0xff]
        %v544 = vld [vmem:[#allocation6 + $0x208] sm:$0xff]
        %v545 = vld [vmem:[#allocation6 + $0x210] sm:$0xff]
        %v546 = vld [vmem:[#allocation6 + $0x218] sm:$0xff]
        %v547 = vld [vmem:[#allocation6 + $0x220] sm:$0xff]
        %v548 = vld [vmem:[#allocation6 + $0x228] sm:$0xff]
        %v549 = vld [vmem:[#allocation6 + $0x230] sm:$0xff]
        %v550 = vld [vmem:[#allocation6 + $0x238] sm:$0xff]
        %v551 = vld [vmem:[#allocation6 + $0x240] sm:$0xff]
        %v552 = vld [vmem:[#allocation6 + $0x248] sm:$0xff]
        %v553 = vld [vmem:[#allocation6 + $0x250] sm:$0xff]
        %v554 = vld [vmem:[#allocation6 + $0x258] sm:$0xff]
        %v555 = vld [vmem:[#allocation6 + $0x260] sm:$0xff]
        %v556 = vld [vmem:[#allocation6 + $0x268] sm:$0xff]
        %v557 = vld [vmem:[#allocation6 + $0x270] sm:$0xff]
        %v558 = vld [vmem:[#allocation6 + $0x278] sm:$0xff]
        %v559 = vld [vmem:[#allocation6 + $0x280] sm:$0xff]
        %v560 = vld [vmem:[#allocation6 + $0x288] sm:$0xff]
        %v561 = vld [vmem:[#allocation6 + $0x290] sm:$0xff]
        %v562 = vld [vmem:[#allocation6 + $0x298] sm:$0xff]
        %v563 = vld [vmem:[#allocation6 + $0x2a0] sm:$0xff]
        %v564 = vld [vmem:[#allocation6 + $0x2a8] sm:$0xff]
        %v565 = vld [vmem:[#allocation6 + $0x2b0] sm:$0xff]
        %v566 = vld [vmem:[#allocation6 + $0x2b8] sm:$0xff]
        %v567 = vld [vmem:[#allocation6 + $0x2c0] sm:$0xff]
        %v568 = vld [vmem:[#allocation6 + $0x2c8] sm:$0xff]
        %v569 = vld [vmem:[#allocation6 + $0x2d0] sm:$0xff]
        %v570 = vld [vmem:[#allocation6 + $0x2d8] sm:$0xff]
        %v571 = vld [vmem:[#allocation6 + $0x2e0] sm:$0xff]
        %v572 = vld [vmem:[#allocation6 + $0x2e8] sm:$0xff]
        %v573 = vld [vmem:[#allocation6 + $0x2f0] sm:$0xff]
        %v574 = vld [vmem:[#allocation6 + $0x2f8] sm:$0xff]
        %v575 = vld [vmem:[%s2] sm:$0x3]
        %v577 = vlaneseq
        %v578 = vshrl.u32 %v577, 7
        %v579 = vsub.s32 0, %v578
        %v580 = vrot.slane %v575, %v579
        %v581 = vlaneseq
        %v582 = vshrl.u32 %v581, 7
        %v583 = vsub.s32 1, %v582
        %v584 = vrot.slane %v575, %v583
        %v683 = vunpack.c.l.b16 %v479
        %v684 = vunpack.c.h.b16 %v479
        %v685 = vunpack.c.l.b16 %v480
        %v686 = vunpack.c.h.b16 %v480
        %v687 = vunpack.c.l.b16 %v481
        %v688 = vunpack.c.h.b16 %v481
        %v689 = vunpack.c.l.b16 %v482
        %v690 = vunpack.c.h.b16 %v482
        %v691 = vunpack.c.l.b16 %v483
        %v692 = vunpack.c.h.b16 %v483
        %v693 = vunpack.c.l.b16 %v484
        %v694 = vunpack.c.h.b16 %v484
        %v695 = vunpack.c.l.b16 %v485
        %v696 = vunpack.c.h.b16 %v485
        %v697 = vunpack.c.l.b16 %v486
        %v698 = vunpack.c.h.b16 %v486
        %v699 = vunpack.c.l.b16 %v487
        %v700 = vunpack.c.h.b16 %v487
        %v701 = vunpack.c.l.b16 %v488
        %v702 = vunpack.c.h.b16 %v488
        %v703 = vunpack.c.l.b16 %v489
        %v704 = vunpack.c.h.b16 %v489
        %v705 = vunpack.c.l.b16 %v490
        %v706 = vunpack.c.h.b16 %v490
        %v707 = vunpack.c.l.b16 %v491
        %v708 = vunpack.c.h.b16 %v491
        %v709 = vunpack.c.l.b16 %v492
        %v710 = vunpack.c.h.b16 %v492
        %v711 = vunpack.c.l.b16 %v493
        %v712 = vunpack.c.h.b16 %v493
        %v713 = vunpack.c.l.b16 %v494
        %v714 = vunpack.c.h.b16 %v494
        %v715 = vunpack.c.l.b16 %v495
        %v716 = vunpack.c.h.b16 %v495
        %v717 = vunpack.c.l.b16 %v496
        %v718 = vunpack.c.h.b16 %v496
        %v719 = vunpack.c.l.b16 %v497
        %v720 = vunpack.c.h.b16 %v497
        %v721 = vunpack.c.l.b16 %v498
        %v722 = vunpack.c.h.b16 %v498
        %v723 = vunpack.c.l.b16 %v499
        %v724 = vunpack.c.h.b16 %v499
        %v725 = vunpack.c.l.b16 %v500
        %v726 = vunpack.c.h.b16 %v500
        %v727 = vunpack.c.l.b16 %v501
        %v728 = vunpack.c.h.b16 %v501
        %v729 = vunpack.c.l.b16 %v502
        %v730 = vunpack.c.h.b16 %v502
        %v731 = vunpack.c.l.b16 %v503
        %v732 = vunpack.c.h.b16 %v503
        %v733 = vunpack.c.l.b16 %v504
        %v734 = vunpack.c.h.b16 %v504
        %v735 = vunpack.c.l.b16 %v505
        %v736 = vunpack.c.h.b16 %v505
        %v737 = vunpack.c.l.b16 %v506
        %v738 = vunpack.c.h.b16 %v506
        %v739 = vunpack.c.l.b16 %v507
        %v740 = vunpack.c.h.b16 %v507
        %v741 = vunpack.c.l.b16 %v508
        %v742 = vunpack.c.h.b16 %v508
        %v743 = vunpack.c.l.b16 %v509
        %v744 = vunpack.c.h.b16 %v509
        %v745 = vunpack.c.l.b16 %v510
        %v746 = vunpack.c.h.b16 %v510
        %v747 = vunpack.c.l.b16 %v511
        %v748 = vunpack.c.h.b16 %v511
        %v749 = vunpack.c.l.b16 %v512
        %v750 = vunpack.c.h.b16 %v512
        %v751 = vunpack.c.l.b16 %v513
        %v752 = vunpack.c.h.b16 %v513
        %v753 = vunpack.c.l.b16 %v514
        %v754 = vunpack.c.h.b16 %v514
        %v755 = vunpack.c.l.b16 %v515
        %v756 = vunpack.c.h.b16 %v515
        %v757 = vunpack.c.l.b16 %v516
        %v758 = vunpack.c.h.b16 %v516
        %v759 = vunpack.c.l.b16 %v517
        %v760 = vunpack.c.h.b16 %v517
        %v761 = vunpack.c.l.b16 %v518
        %v762 = vunpack.c.h.b16 %v518
        %v763 = vunpack.c.l.b16 %v519
        %v764 = vunpack.c.h.b16 %v519
        %v765 = vunpack.c.l.b16 %v520
        %v766 = vunpack.c.h.b16 %v520
        %v767 = vunpack.c.l.b16 %v521
        %v768 = vunpack.c.h.b16 %v521
        %v769 = vunpack.c.l.b16 %v522
        %v770 = vunpack.c.h.b16 %v522
        %v771 = vunpack.c.l.b16 %v523
        %v772 = vunpack.c.h.b16 %v523
        %v773 = vunpack.c.l.b16 %v524
        %v774 = vunpack.c.h.b16 %v524
        %v775 = vunpack.c.l.b16 %v525
        %v776 = vunpack.c.h.b16 %v525
        %v777 = vunpack.c.l.b16 %v526
        %v778 = vunpack.c.h.b16 %v526
        %v779 = vunpack.c.l.b16 %v527
        %v780 = vunpack.c.h.b16 %v527
        %v781 = vunpack.c.l.b16 %v528
        %v782 = vunpack.c.h.b16 %v528
        %v783 = vunpack.c.l.b16 %v529
        %v784 = vunpack.c.h.b16 %v529
        %v785 = vunpack.c.l.b16 %v530
        %v786 = vunpack.c.h.b16 %v530
        %v787 = vunpack.c.l.b16 %v531
        %v788 = vunpack.c.h.b16 %v531
        %v789 = vunpack.c.l.b16 %v532
        %v790 = vunpack.c.h.b16 %v532
        %v791 = vunpack.c.l.b16 %v533
        %v792 = vunpack.c.h.b16 %v533
        %v793 = vunpack.c.l.b16 %v534
        %v794 = vunpack.c.h.b16 %v534
        %v795 = vunpack.c.l.b16 %v535
        %v796 = vunpack.c.h.b16 %v535
        %v797 = vunpack.c.l.b16 %v536
        %v798 = vunpack.c.h.b16 %v536
        %v799 = vunpack.c.l.b16 %v537
        %v800 = vunpack.c.h.b16 %v537
        %v801 = vunpack.c.l.b16 %v538
        %v802 = vunpack.c.h.b16 %v538
        %v803 = vunpack.c.l.b16 %v539
        %v804 = vunpack.c.h.b16 %v539
        %v805 = vunpack.c.l.b16 %v540
        %v806 = vunpack.c.h.b16 %v540
        %v807 = vunpack.c.l.b16 %v541
        %v808 = vunpack.c.h.b16 %v541
        %v809 = vunpack.c.l.b16 %v542
        %v810 = vunpack.c.h.b16 %v542
        %v811 = vunpack.c.l.b16 %v543
        %v812 = vunpack.c.h.b16 %v543
        %v813 = vunpack.c.l.b16 %v544
        %v814 = vunpack.c.h.b16 %v544
        %v815 = vunpack.c.l.b16 %v545
        %v816 = vunpack.c.h.b16 %v545
        %v817 = vunpack.c.l.b16 %v546
        %v818 = vunpack.c.h.b16 %v546
        %v819 = vunpack.c.l.b16 %v547
        %v820 = vunpack.c.h.b16 %v547
        %v821 = vunpack.c.l.b16 %v548
        %v822 = vunpack.c.h.b16 %v548
        %v823 = vunpack.c.l.b16 %v549
        %v824 = vunpack.c.h.b16 %v549
        %v825 = vunpack.c.l.b16 %v550
        %v826 = vunpack.c.h.b16 %v550
        %v827 = vunpack.c.l.b16 %v551
        %v828 = vunpack.c.h.b16 %v551
        %v829 = vunpack.c.l.b16 %v552
        %v830 = vunpack.c.h.b16 %v552
        %v831 = vunpack.c.l.b16 %v553
        %v832 = vunpack.c.h.b16 %v553
        %v833 = vunpack.c.l.b16 %v554
        %v834 = vunpack.c.h.b16 %v554
        %v835 = vunpack.c.l.b16 %v555
        %v836 = vunpack.c.h.b16 %v555
        %v837 = vunpack.c.l.b16 %v556
        %v838 = vunpack.c.h.b16 %v556
        %v839 = vunpack.c.l.b16 %v557
        %v840 = vunpack.c.h.b16 %v557
        %v841 = vunpack.c.l.b16 %v558
        %v842 = vunpack.c.h.b16 %v558
        %v843 = vunpack.c.l.b16 %v559
        %v844 = vunpack.c.h.b16 %v559
        %v845 = vunpack.c.l.b16 %v560
        %v846 = vunpack.c.h.b16 %v560
        %v847 = vunpack.c.l.b16 %v561
        %v848 = vunpack.c.h.b16 %v561
        %v849 = vunpack.c.l.b16 %v562
        %v850 = vunpack.c.h.b16 %v562
        %v851 = vunpack.c.l.b16 %v563
        %v852 = vunpack.c.h.b16 %v563
        %v853 = vunpack.c.l.b16 %v564
        %v854 = vunpack.c.h.b16 %v564
        %v855 = vunpack.c.l.b16 %v565
        %v856 = vunpack.c.h.b16 %v565
        %v857 = vunpack.c.l.b16 %v566
        %v858 = vunpack.c.h.b16 %v566
        %v859 = vunpack.c.l.b16 %v567
        %v860 = vunpack.c.h.b16 %v567
        %v861 = vunpack.c.l.b16 %v568
        %v862 = vunpack.c.h.b16 %v568
        %v863 = vunpack.c.l.b16 %v569
        %v864 = vunpack.c.h.b16 %v569
        %v865 = vunpack.c.l.b16 %v570
        %v866 = vunpack.c.h.b16 %v570
        %v867 = vunpack.c.l.b16 %v571
        %v868 = vunpack.c.h.b16 %v571
        %v869 = vunpack.c.l.b16 %v572
        %v870 = vunpack.c.h.b16 %v572
        %v871 = vunpack.c.l.b16 %v573
        %v872 = vunpack.c.h.b16 %v573
        %v873 = vunpack.c.l.b16 %v574
        %v874 = vunpack.c.h.b16 %v574
        %v875 = vpack.c.b16 %v685, %v683
        %v876 = vpack.c.b16 %v686, %v684
        %v877 = vpack.c.b16 %v689, %v687
        %v878 = vpack.c.b16 %v690, %v688
        %v879 = vpack.c.b16 %v693, %v691
        %v880 = vpack.c.b16 %v694, %v692
        %v881 = vpack.c.b16 %v697, %v695
        %v882 = vpack.c.b16 %v698, %v696
        %v883 = vpack.c.b16 %v701, %v699
        %v884 = vpack.c.b16 %v702, %v700
        %v885 = vpack.c.b16 %v705, %v703
        %v886 = vpack.c.b16 %v706, %v704
        %v887 = vpack.c.b16 %v709, %v707
        %v888 = vpack.c.b16 %v710, %v708
        %v889 = vpack.c.b16 %v713, %v711
        %v890 = vpack.c.b16 %v714, %v712
        %v891 = vpack.c.b16 %v717, %v715
        %v892 = vpack.c.b16 %v718, %v716
        %v893 = vpack.c.b16 %v721, %v719
        %v894 = vpack.c.b16 %v722, %v720
        %v895 = vpack.c.b16 %v725, %v723
        %v896 = vpack.c.b16 %v726, %v724
        %v897 = vpack.c.b16 %v729, %v727
        %v898 = vpack.c.b16 %v730, %v728
        %v899 = vpack.c.b16 %v733, %v731
        %v900 = vpack.c.b16 %v734, %v732
        %v901 = vpack.c.b16 %v737, %v735
        %v902 = vpack.c.b16 %v738, %v736
        %v903 = vpack.c.b16 %v741, %v739
        %v904 = vpack.c.b16 %v742, %v740
        %v905 = vpack.c.b16 %v745, %v743
        %v906 = vpack.c.b16 %v746, %v744
        %v907 = vpack.c.b16 %v749, %v747
        %v908 = vpack.c.b16 %v750, %v748
        %v909 = vpack.c.b16 %v753, %v751
        %v910 = vpack.c.b16 %v754, %v752
        %v911 = vpack.c.b16 %v757, %v755
        %v912 = vpack.c.b16 %v758, %v756
        %v913 = vpack.c.b16 %v761, %v759
        %v914 = vpack.c.b16 %v762, %v760
        %v915 = vpack.c.b16 %v765, %v763
        %v916 = vpack.c.b16 %v766, %v764
        %v917 = vpack.c.b16 %v769, %v767
        %v918 = vpack.c.b16 %v770, %v768
        %v919 = vpack.c.b16 %v773, %v771
        %v920 = vpack.c.b16 %v774, %v772
        %v921 = vpack.c.b16 %v777, %v775
        %v922 = vpack.c.b16 %v778, %v776
        %v923 = vpack.c.b16 %v781, %v779
        %v924 = vpack.c.b16 %v782, %v780
        %v925 = vpack.c.b16 %v785, %v783
        %v926 = vpack.c.b16 %v786, %v784
        %v927 = vpack.c.b16 %v789, %v787
        %v928 = vpack.c.b16 %v790, %v788
        %v929 = vpack.c.b16 %v793, %v791
        %v930 = vpack.c.b16 %v794, %v792
        %v931 = vpack.c.b16 %v797, %v795
        %v932 = vpack.c.b16 %v798, %v796
        %v933 = vpack.c.b16 %v801, %v799
        %v934 = vpack.c.b16 %v802, %v800
        %v935 = vpack.c.b16 %v805, %v803
        %v936 = vpack.c.b16 %v806, %v804
        %v937 = vpack.c.b16 %v809, %v807
        %v938 = vpack.c.b16 %v810, %v808
        %v939 = vpack.c.b16 %v813, %v811
        %v940 = vpack.c.b16 %v814, %v812
        %v941 = vpack.c.b16 %v817, %v815
        %v942 = vpack.c.b16 %v818, %v816
        %v943 = vpack.c.b16 %v821, %v819
        %v944 = vpack.c.b16 %v822, %v820
        %v945 = vpack.c.b16 %v825, %v823
        %v946 = vpack.c.b16 %v826, %v824
        %v947 = vpack.c.b16 %v829, %v827
        %v948 = vpack.c.b16 %v830, %v828
        %v949 = vpack.c.b16 %v833, %v831
        %v950 = vpack.c.b16 %v834, %v832
        %v951 = vpack.c.b16 %v837, %v835
        %v952 = vpack.c.b16 %v838, %v836
        %v953 = vpack.c.b16 %v841, %v839
        %v954 = vpack.c.b16 %v842, %v840
        %v955 = vpack.c.b16 %v845, %v843
        %v956 = vpack.c.b16 %v846, %v844
        %v957 = vpack.c.b16 %v849, %v847
        %v958 = vpack.c.b16 %v850, %v848
        %v959 = vpack.c.b16 %v853, %v851
        %v960 = vpack.c.b16 %v854, %v852
        %v961 = vpack.c.b16 %v857, %v855
        %v962 = vpack.c.b16 %v858, %v856
        %v963 = vpack.c.b16 %v861, %v859
        %v964 = vpack.c.b16 %v862, %v860
        %v965 = vpack.c.b16 %v865, %v863
        %v966 = vpack.c.b16 %v866, %v864
        %v967 = vpack.c.b16 %v869, %v867
        %v968 = vpack.c.b16 %v870, %v868
        %v969 = vpack.c.b16 %v873, %v871
        %v970 = vpack.c.b16 %v874, %v872
        %1067 = vmatprep.subr.bf16.mxu0 %v876
        %1068 = vmatpush1.bf16.msra.mxu0 %v875
        %1069 = vmatprep.subr.bf16.mxu0 %v878
        %1070 = vmatpush1.bf16.msra.mxu0 %v877
        %1071 = vmatprep.subr.bf16.mxu0 %v880
        %1072 = vmatpush1.bf16.msra.mxu0 %v879
        %1073 = vmatprep.subr.bf16.mxu0 %v882
        %1074 = vmatpush1.bf16.msra.mxu0 %v881
        %1075 = vmatprep.subr.bf16.mxu0 %v884
        %1076 = vmatpush1.bf16.msra.mxu0 %v883
        %1077 = vmatprep.subr.bf16.mxu0 %v886
        %1078 = vmatpush1.bf16.msra.mxu0 %v885
        %1079 = vmatprep.subr.bf16.mxu0 %v888
        %1080 = vmatpush1.bf16.msra.mxu0 %v887
        %1081 = vmatprep.subr.bf16.mxu0 %v890
        %1082 = vmatpush1.bf16.msra.mxu0 %v889
        %1083 = vmatprep.subr.bf16.mxu0 %v892
        %1084 = vmatpush1.bf16.msra.mxu0 %v891
        %1085 = vmatprep.subr.bf16.mxu0 %v894
        %1086 = vmatpush1.bf16.msra.mxu0 %v893
        %1087 = vmatprep.subr.bf16.mxu0 %v896
        %1088 = vmatpush1.bf16.msra.mxu0 %v895
        %1089 = vmatprep.subr.bf16.mxu0 %v898
        %1090 = vmatpush1.bf16.msra.mxu0 %v897
        %1091 = vmatprep.subr.bf16.mxu0 %v900
        %1092 = vmatpush1.bf16.msra.mxu0 %v899
        %1093 = vmatprep.subr.bf16.mxu0 %v902
        %1094 = vmatpush1.bf16.msra.mxu0 %v901
        %1095 = vmatprep.subr.bf16.mxu0 %v904
        %1096 = vmatpush1.bf16.msra.mxu0 %v903
        %1097 = vmatprep.subr.bf16.mxu0 %v906
        %1098 = vmatpush1.bf16.msra.mxu0 %v905
        %1099 = vmatprep.mubr.bf16.mxu0 %v468
        %1100 = vmatmul.mubr.bf16.gmra.mrb[0].mxu0 %v467
        %v1101 = vpop.f32.mrb[0].mxu0
        %v1102 = vadd.f32 %v580, %v1101
        %v1103 = vpop.f32.mrb[0].mxu0
        %v1104 = vadd.f32 %v584, %v1103
        %v1105 = vpop.f32.mrb[0].mxu0
        %v1106 = vadd.f32 %v580, %v1105
        %v1107 = vpop.f32.mrb[0].mxu0
        %v1108 = vadd.f32 %v584, %v1107
        %1109 = vmatprep.mubr.bf16.mxu0 %v474
        %1110 = vmatmul.mubr.bf16.gmra.mrb[0].mxu0 %v473
        %v1111 = vpop.f32.mrb[0].mxu0
        %v1112 = vadd.f32 %v580, %v1111
        %v1113 = vpop.f32.mrb[0].mxu0
        %v1114 = vadd.f32 %v584, %v1113
        %v1115 = vpop.f32.mrb[0].mxu0
        %v1116 = vadd.f32 %v580, %v1115
        %v1117 = vpop.f32.mrb[0].mxu0
        %v1118 = vadd.f32 %v584, %v1117
        %1119 = vdwg.mxu0
        %1120 = vmatprep.subr.bf16.mxu0 %v908
        %1121 = vmatpush1.bf16.msra.mxu0 %v907
        %1122 = vmatprep.subr.bf16.mxu0 %v910
        %1123 = vmatpush1.bf16.msra.mxu0 %v909
        %1124 = vmatprep.subr.bf16.mxu0 %v912
        %1125 = vmatpush1.bf16.msra.mxu0 %v911
        %1126 = vmatprep.subr.bf16.mxu0 %v914
        %1127 = vmatpush1.bf16.msra.mxu0 %v913
        %1128 = vmatprep.subr.bf16.mxu0 %v916
        %1129 = vmatpush1.bf16.msra.mxu0 %v915
        %1130 = vmatprep.subr.bf16.mxu0 %v918
        %1131 = vmatpush1.bf16.msra.mxu0 %v917
        %1132 = vmatprep.subr.bf16.mxu0 %v920
        %1133 = vmatpush1.bf16.msra.mxu0 %v919
        %1134 = vmatprep.subr.bf16.mxu0 %v922
        %1135 = vmatpush1.bf16.msra.mxu0 %v921
        %1136 = vmatprep.subr.bf16.mxu0 %v924
        %1137 = vmatpush1.bf16.msra.mxu0 %v923
        %1138 = vmatprep.subr.bf16.mxu0 %v926
        %1139 = vmatpush1.bf16.msra.mxu0 %v925
        %1140 = vmatprep.subr.bf16.mxu0 %v928
        %1141 = vmatpush1.bf16.msra.mxu0 %v927
        %1142 = vmatprep.subr.bf16.mxu0 %v930
        %1143 = vmatpush1.bf16.msra.mxu0 %v929
        %1144 = vmatprep.subr.bf16.mxu0 %v932
        %1145 = vmatpush1.bf16.msra.mxu0 %v931
        %1146 = vmatprep.subr.bf16.mxu0 %v934
        %1147 = vmatpush1.bf16.msra.mxu0 %v933
        %1148 = vmatprep.subr.bf16.mxu0 %v936
        %1149 = vmatpush1.bf16.msra.mxu0 %v935
        %1150 = vmatprep.subr.bf16.mxu0 %v938
        %1151 = vmatpush1.bf16.msra.mxu0 %v937
        %1152 = vmatprep.mubr.bf16.mxu0 %v470
        %1153 = vmatmul.mubr.bf16.gmra.mrb[0].mxu0 %v469
        %v1154 = vpop.f32.mrb[0].mxu0
        %v1155 = vadd.f32 %v1102, %v1154
        %v1156 = vpop.f32.mrb[0].mxu0
        %v1157 = vadd.f32 %v1104, %v1156
        %v1158 = vpop.f32.mrb[0].mxu0
        %v1159 = vadd.f32 %v1106, %v1158
        %v1160 = vpop.f32.mrb[0].mxu0
        %v1161 = vadd.f32 %v1108, %v1160
        %1162 = vmatprep.mubr.bf16.mxu0 %v476
        %1163 = vmatmul.mubr.bf16.gmra.mrb[0].mxu0 %v475
        %v1164 = vpop.f32.mrb[0].mxu0
        %v1165 = vadd.f32 %v1112, %v1164
        %v1166 = vpop.f32.mrb[0].mxu0
        %v1167 = vadd.f32 %v1114, %v1166
        %v1168 = vpop.f32.mrb[0].mxu0
        %v1169 = vadd.f32 %v1116, %v1168
        %v1170 = vpop.f32.mrb[0].mxu0
        %v1171 = vadd.f32 %v1118, %v1170
        %1172 = vdwg.mxu0
        %1173 = vmatprep.subr.bf16.mxu0 %v940
        %1174 = vmatpush1.bf16.msra.mxu0 %v939
        %1175 = vmatprep.subr.bf16.mxu0 %v942
        %1176 = vmatpush1.bf16.msra.mxu0 %v941
        %1177 = vmatprep.subr.bf16.mxu0 %v944
        %1178 = vmatpush1.bf16.msra.mxu0 %v943
        %1179 = vmatprep.subr.bf16.mxu0 %v946
        %1180 = vmatpush1.bf16.msra.mxu0 %v945
        %1181 = vmatprep.subr.bf16.mxu0 %v948
        %1182 = vmatpush1.bf16.msra.mxu0 %v947
        %1183 = vmatprep.subr.bf16.mxu0 %v950
        %1184 = vmatpush1.bf16.msra.mxu0 %v949
        %1185 = vmatprep.subr.bf16.mxu0 %v952
        %1186 = vmatpush1.bf16.msra.mxu0 %v951
        %1187 = vmatprep.subr.bf16.mxu0 %v954
        %1188 = vmatpush1.bf16.msra.mxu0 %v953
        %1189 = vmatprep.subr.bf16.mxu0 %v956
        %1190 = vmatpush1.bf16.msra.mxu0 %v955
        %1191 = vmatprep.subr.bf16.mxu0 %v958
        %1192 = vmatpush1.bf16.msra.mxu0 %v957
        %1193 = vmatprep.subr.bf16.mxu0 %v960
        %1194 = vmatpush1.bf16.msra.mxu0 %v959
        %1195 = vmatprep.subr.bf16.mxu0 %v962
        %1196 = vmatpush1.bf16.msra.mxu0 %v961
        %1197 = vmatprep.subr.bf16.mxu0 %v964
        %1198 = vmatpush1.bf16.msra.mxu0 %v963
        %1199 = vmatprep.subr.bf16.mxu0 %v966
        %1200 = vmatpush1.bf16.msra.mxu0 %v965
        %1201 = vmatprep.subr.bf16.mxu0 %v968
        %1202 = vmatpush1.bf16.msra.mxu0 %v967
        %1203 = vmatprep.subr.bf16.mxu0 %v970
        %1204 = vmatpush1.bf16.msra.mxu0 %v969
        %1205 = vmatprep.mubr.bf16.mxu0 %v472
        %1206 = vmatmul.mubr.bf16.gmra.mrb[0].mxu0 %v471
        %v1207 = vpop.f32.mrb[0].mxu0
        %v1208 = vadd.f32 %v1155, %v1207
        %v1209 = vpop.f32.mrb[0].mxu0
        %v1210 = vadd.f32 %v1157, %v1209
        %v1211 = vpop.f32.mrb[0].mxu0
        %v1212 = vadd.f32 %v1159, %v1211
        %v1213 = vpop.f32.mrb[0].mxu0
        %v1214 = vadd.f32 %v1161, %v1213
        %1215 = vmatprep.mubr.bf16.mxu0 %v478
        %1216 = vmatmul.mubr.bf16.gmra.mrb[0].mxu0 %v477
        %v1217 = vpop.f32.mrb[0].mxu0
        %v1218 = vadd.f32 %v1165, %v1217
        %v1219 = vpop.f32.mrb[0].mxu0
        %v1220 = vadd.f32 %v1167, %v1219
        %v1221 = vpop.f32.mrb[0].mxu0
        %v1222 = vadd.f32 %v1169, %v1221
        %v1223 = vpop.f32.mrb[0].mxu0
        %v1224 = vadd.f32 %v1171, %v1223
        %1225 = vdwg.mxu0
        %v1226 = vmax.f32 %v1208, 0.0
        %v1227 = vmax.f32 %v1210, 0.0
        %v1228 = vmax.f32 %v1212, 0.0
        %v1229 = vmax.f32 %v1214, 0.0
        %v1230 = vmax.f32 %v1218, 0.0
        %v1231 = vmax.f32 %v1220, 0.0
        %v1232 = vmax.f32 %v1222, 0.0
        %v1233 = vmax.f32 %v1224, 0.0
        %1234 = vst [vmem:[#allocation2 + $0x10] sm:$0xff] %v1226
        %1235 = vst [vmem:[#allocation2 + $0x18] sm:$0xff] %v1227
        %1236 = vst [vmem:[#allocation2 + $0x40] sm:$0xff] %v1228
        %1237 = vst [vmem:[#allocation2 + $0x48] sm:$0xff] %v1229
        %1238 = vst [vmem:[#allocation2 + $0x70] sm:$0xff] %v1230
        %1239 = vst [vmem:[#allocation2 + $0x78] sm:$0xff] %v1231
        %1240 = vst [vmem:[#allocation2 + $0xa0] sm:$0xff] %v1232
        %1241 = vst [vmem:[#allocation2 + $0xa8] sm:$0xff] %v1233
        %v1250 = vrot.slane %v1226, 7
        %v1251 = vrot.slane %v1227, 7
        %v1252 = vrot.slane %v1228, 7
        %v1253 = vsel %vm370, %v1250, %v1252
        %v1254 = vrot.slane %v1229, 7
        %v1255 = vsel %vm370, %v1251, %v1254
        %v1256 = vrot.slane %v1230, 7
        %v1257 = vrot.slane %v1231, 7
        %v1258 = vrot.slane %v1232, 7
        %v1259 = vsel %vm370, %v1256, %v1258
        %v1260 = vrot.slane %v1233, 7
        %v1261 = vsel %vm370, %v1257, %v1260
        %1270 = vst [vmem:[#allocation2] sm:$0xfe] %v1250
        %1271 = vst [vmem:[#allocation2 + $0x8] sm:$0xfe] %v1251
        %1272 = vst [vmem:[#allocation2 + $0x30] sm:$0xff] %v1253
        %1273 = vst [vmem:[#allocation2 + $0x38] sm:$0xff] %v1255
        %1274 = vst [vmem:[#allocation2 + $0x60] sm:$0xfe] %v1256
        %1275 = vst [vmem:[#allocation2 + $0x68] sm:$0xfe] %v1257
        %1276 = vst [vmem:[#allocation2 + $0x90] sm:$0xff] %v1259
        %1277 = vst [vmem:[#allocation2 + $0x98] sm:$0xff] %v1261
        %1278 = vst.msk [vmem:[#allocation2] ss:$8 sm:$0x3] %vm402, 0.0
        %1279 = vst.msk [vmem:[#allocation2] ss:$8 sm:$0x0] %vm402, 0.0
        %1280 = vst.msk [vmem:[%s405] ss:$8 sm:$0x3] %vm402, 0.0
        %1281 = vst.msk [vmem:[%s405] ss:$8 sm:$0x0] %vm402, 0.0
        %v1282 = vrot.slane %v1226, 1
        %v1283 = vrot.slane %v1228, 1
        %v1284 = vsel %vm408, %v1282, %v1283
        %v1285 = vrot.slane %v1227, 1
        %v1286 = vrot.slane %v1229, 1
        %v1287 = vsel %vm408, %v1285, %v1286
        %v1288 = vrot.slane %v1230, 1
        %v1289 = vrot.slane %v1232, 1
        %v1290 = vsel %vm408, %v1288, %v1289
        %v1291 = vrot.slane %v1231, 1
        %v1292 = vrot.slane %v1233, 1
        %v1293 = vsel %vm408, %v1291, %v1292
        %1302 = vst [vmem:[#allocation2 + $0x20] sm:$0xff] %v1284
        %1303 = vst [vmem:[#allocation2 + $0x28] sm:$0xff] %v1287
        %1304 = vst [vmem:[#allocation2 + $0x50] sm:$0x7f] %v1283
        %1305 = vst [vmem:[#allocation2 + $0x58] sm:$0x7f] %v1286
        %1306 = vst [vmem:[#allocation2 + $0x80] sm:$0xff] %v1290
        %1307 = vst [vmem:[#allocation2 + $0x88] sm:$0xff] %v1293
        %1308 = vst [vmem:[#allocation2 + $0xb0] sm:$0x7f] %v1289
        %1309 = vst [vmem:[#allocation2 + $0xb8] sm:$0x7f] %v1292
        %1310 = vst.msk [vmem:[%s437] ss:$8 sm:$0x3] %vm402, 0.0
        %1311 = vst.msk [vmem:[%s437] ss:$8 sm:$0x0] %vm402, 0.0
        %1312 = vst.msk [vmem:[%s440] ss:$8 sm:$0x3] %vm402, 0.0
        %1313 = vst.msk [vmem:[%s440] ss:$8 sm:$0x0] %vm402, 0.0
        %v1314 = vld [vmem:[#allocation2] sm:$0xff]
        %v1315 = vld [vmem:[#allocation2 + $0x8] sm:$0xff]
        %v1316 = vld [vmem:[#allocation2 + $0x10] sm:$0xff]
        %v1317 = vld [vmem:[#allocation2 + $0x18] sm:$0xff]
        %v1318 = vld [vmem:[#allocation2 + $0x20] sm:$0xff]
        %v1319 = vld [vmem:[#allocation2 + $0x28] sm:$0xff]
        %v1320 = vld [vmem:[#allocation2 + $0x30] sm:$0xff]
        %v1321 = vld [vmem:[#allocation2 + $0x38] sm:$0xff]
        %v1322 = vld [vmem:[#allocation2 + $0x40] sm:$0xff]
        %v1323 = vld [vmem:[#allocation2 + $0x48] sm:$0xff]
        %v1324 = vld [vmem:[#allocation2 + $0x50] sm:$0xff]
        %v1325 = vld [vmem:[#allocation2 + $0x58] sm:$0xff]
        %v1326 = vld [vmem:[#allocation2 + $0x60] sm:$0xff]
        %v1327 = vld [vmem:[#allocation2 + $0x68] sm:$0xff]
        %v1328 = vld [vmem:[#allocation2 + $0x70] sm:$0xff]
        %v1329 = vld [vmem:[#allocation2 + $0x78] sm:$0xff]
        %v1330 = vld [vmem:[#allocation2 + $0x80] sm:$0xff]
        %v1331 = vld [vmem:[#allocation2 + $0x88] sm:$0xff]
        %v1332 = vld [vmem:[#allocation2 + $0x90] sm:$0xff]
        %v1333 = vld [vmem:[#allocation2 + $0x98] sm:$0xff]
        %v1334 = vld [vmem:[#allocation2 + $0xa0] sm:$0xff]
        %v1335 = vld [vmem:[#allocation2 + $0xa8] sm:$0xff]
        %v1336 = vld [vmem:[#allocation2 + $0xb0] sm:$0xff]
        %v1337 = vld [vmem:[#allocation2 + $0xb8] sm:$0xff]
        %v1338 = vpack.c.bf16 %v1320, %v1314
        %v1339 = vpack.c.bf16 %v1321, %v1315
        %v1340 = vpack.c.bf16 %v1322, %v1316
        %v1341 = vpack.c.bf16 %v1323, %v1317
        %v1342 = vpack.c.bf16 %v1324, %v1318
        %v1343 = vpack.c.bf16 %v1325, %v1319
        %v1344 = vpack.c.bf16 %v1332, %v1326
        %v1345 = vpack.c.bf16 %v1333, %v1327
        %v1346 = vpack.c.bf16 %v1334, %v1328
        %v1347 = vpack.c.bf16 %v1335, %v1329
        %v1348 = vpack.c.bf16 %v1336, %v1330
        %v1349 = vpack.c.bf16 %v1337, %v1331
        %v1350 = vld [vmem:[#allocation8] sm:$0xff]
        %v1351 = vld [vmem:[#allocation8 + $0x8] sm:$0xff]
        %v1352 = vld [vmem:[#allocation8 + $0x10] sm:$0xff]
        %v1353 = vld [vmem:[#allocation8 + $0x18] sm:$0xff]
        %v1354 = vld [vmem:[#allocation8 + $0x20] sm:$0xff]
        %v1355 = vld [vmem:[#allocation8 + $0x28] sm:$0xff]
        %v1356 = vld [vmem:[#allocation8 + $0x30] sm:$0xff]
        %v1357 = vld [vmem:[#allocation8 + $0x38] sm:$0xff]
        %v1358 = vld [vmem:[#allocation8 + $0x40] sm:$0xff]
        %v1359 = vld [vmem:[#allocation8 + $0x48] sm:$0xff]
        %v1360 = vld [vmem:[#allocation8 + $0x50] sm:$0xff]
        %v1361 = vld [vmem:[#allocation8 + $0x58] sm:$0xff]
        %v1362 = vld [vmem:[#allocation8 + $0x60] sm:$0xff]
        %v1363 = vld [vmem:[#allocation8 + $0x68] sm:$0xff]
        %v1364 = vld [vmem:[#allocation8 + $0x70] sm:$0xff]
        %v1365 = vld [vmem:[#allocation8 + $0x78] sm:$0xff]
        %v1366 = vld [vmem:[#allocation8 + $0x80] sm:$0xff]
        %v1367 = vld [vmem:[#allocation8 + $0x88] sm:$0xff]
        %v1368 = vld [vmem:[#allocation8 + $0x90] sm:$0xff]
        %v1369 = vld [vmem:[#allocation8 + $0x98] sm:$0xff]
        %v1370 = vld [vmem:[#allocation8 + $0xa0] sm:$0xff]
        %v1371 = vld [vmem:[#allocation8 + $0xa8] sm:$0xff]
        %v1372 = vld [vmem:[#allocation8 + $0xb0] sm:$0xff]
        %v1373 = vld [vmem:[#allocation8 + $0xb8] sm:$0xff]
        %v1374 = vld [vmem:[#allocation8 + $0xc0] sm:$0xff]
        %v1375 = vld [vmem:[#allocation8 + $0xc8] sm:$0xff]
        %v1376 = vld [vmem:[#allocation8 + $0xd0] sm:$0xff]
        %v1377 = vld [vmem:[#allocation8 + $0xd8] sm:$0xff]
        %v1378 = vld [vmem:[#allocation8 + $0xe0] sm:$0xff]
        %v1379 = vld [vmem:[#allocation8 + $0xe8] sm:$0xff]
        %v1380 = vld [vmem:[#allocation8 + $0xf0] sm:$0xff]
        %v1381 = vld [vmem:[#allocation8 + $0xf8] sm:$0xff]
        %v1382 = vld [vmem:[#allocation8 + $0x100] sm:$0xff]
        %v1383 = vld [vmem:[#allocation8 + $0x108] sm:$0xff]
        %v1384 = vld [vmem:[#allocation8 + $0x110] sm:$0xff]
        %v1385 = vld [vmem:[#allocation8 + $0x118] sm:$0xff]
        %v1386 = vld [vmem:[#allocation8 + $0x120] sm:$0xff]
        %v1387 = vld [vmem:[#allocation8 + $0x128] sm:$0xff]
        %v1388 = vld [vmem:[#allocation8 + $0x130] sm:$0xff]
        %v1389 = vld [vmem:[#allocation8 + $0x138] sm:$0xff]
        %v1390 = vld [vmem:[#allocation8 + $0x140] sm:$0xff]
        %v1391 = vld [vmem:[#allocation8 + $0x148] sm:$0xff]
        %v1392 = vld [vmem:[#allocation8 + $0x150] sm:$0xff]
        %v1393 = vld [vmem:[#allocation8 + $0x158] sm:$0xff]
        %v1394 = vld [vmem:[#allocation8 + $0x160] sm:$0xff]
        %v1395 = vld [vmem:[#allocation8 + $0x168] sm:$0xff]
        %v1396 = vld [vmem:[#allocation8 + $0x170] sm:$0xff]
        %v1397 = vld [vmem:[#allocation8 + $0x178] sm:$0xff]
        %v1398 = vld [vmem:[#allocation8 + $0x180] sm:$0xff]
        %v1399 = vld [vmem:[#allocation8 + $0x188] sm:$0xff]
        %v1400 = vld [vmem:[#allocation8 + $0x190] sm:$0xff]
        %v1401 = vld [vmem:[#allocation8 + $0x198] sm:$0xff]
        %v1402 = vld [vmem:[#allocation8 + $0x1a0] sm:$0xff]
        %v1403 = vld [vmem:[#allocation8 + $0x1a8] sm:$0xff]
        %v1404 = vld [vmem:[#allocation8 + $0x1b0] sm:$0xff]
        %v1405 = vld [vmem:[#allocation8 + $0x1b8] sm:$0xff]
        %v1406 = vld [vmem:[#allocation8 + $0x1c0] sm:$0xff]
        %v1407 = vld [vmem:[#allocation8 + $0x1c8] sm:$0xff]
        %v1408 = vld [vmem:[#allocation8 + $0x1d0] sm:$0xff]
        %v1409 = vld [vmem:[#allocation8 + $0x1d8] sm:$0xff]
        %v1410 = vld [vmem:[#allocation8 + $0x1e0] sm:$0xff]
        %v1411 = vld [vmem:[#allocation8 + $0x1e8] sm:$0xff]
        %v1412 = vld [vmem:[#allocation8 + $0x1f0] sm:$0xff]
        %v1413 = vld [vmem:[#allocation8 + $0x1f8] sm:$0xff]
        %v1414 = vld [vmem:[#allocation8 + $0x200] sm:$0xff]
        %v1415 = vld [vmem:[#allocation8 + $0x208] sm:$0xff]
        %v1416 = vld [vmem:[#allocation8 + $0x210] sm:$0xff]
        %v1417 = vld [vmem:[#allocation8 + $0x218] sm:$0xff]
        %v1418 = vld [vmem:[#allocation8 + $0x220] sm:$0xff]
        %v1419 = vld [vmem:[#allocation8 + $0x228] sm:$0xff]
        %v1420 = vld [vmem:[#allocation8 + $0x230] sm:$0xff]
        %v1421 = vld [vmem:[#allocation8 + $0x238] sm:$0xff]
        %v1422 = vld [vmem:[#allocation8 + $0x240] sm:$0xff]
        %v1423 = vld [vmem:[#allocation8 + $0x248] sm:$0xff]
        %v1424 = vld [vmem:[#allocation8 + $0x250] sm:$0xff]
        %v1425 = vld [vmem:[#allocation8 + $0x258] sm:$0xff]
        %v1426 = vld [vmem:[#allocation8 + $0x260] sm:$0xff]
        %v1427 = vld [vmem:[#allocation8 + $0x268] sm:$0xff]
        %v1428 = vld [vmem:[#allocation8 + $0x270] sm:$0xff]
        %v1429 = vld [vmem:[#allocation8 + $0x278] sm:$0xff]
        %v1430 = vld [vmem:[#allocation8 + $0x280] sm:$0xff]
        %v1431 = vld [vmem:[#allocation8 + $0x288] sm:$0xff]
        %v1432 = vld [vmem:[#allocation8 + $0x290] sm:$0xff]
        %v1433 = vld [vmem:[#allocation8 + $0x298] sm:$0xff]
        %v1434 = vld [vmem:[#allocation8 + $0x2a0] sm:$0xff]
        %v1435 = vld [vmem:[#allocation8 + $0x2a8] sm:$0xff]
        %v1436 = vld [vmem:[#allocation8 + $0x2b0] sm:$0xff]
        %v1437 = vld [vmem:[#allocation8 + $0x2b8] sm:$0xff]
        %v1438 = vld [vmem:[#allocation8 + $0x2c0] sm:$0xff]
        %v1439 = vld [vmem:[#allocation8 + $0x2c8] sm:$0xff]
        %v1440 = vld [vmem:[#allocation8 + $0x2d0] sm:$0xff]
        %v1441 = vld [vmem:[#allocation8 + $0x2d8] sm:$0xff]
        %v1442 = vld [vmem:[#allocation8 + $0x2e0] sm:$0xff]
        %v1443 = vld [vmem:[#allocation8 + $0x2e8] sm:$0xff]
        %v1444 = vld [vmem:[#allocation8 + $0x2f0] sm:$0xff]
        %v1445 = vld [vmem:[#allocation8 + $0x2f8] sm:$0xff]
        %v1446 = vld [vmem:[#allocation9] sm:$0x3]
        %v1448 = vlaneseq
        %v1449 = vshrl.u32 %v1448, 7
        %v1450 = vsub.s32 0, %v1449
        %v1451 = vrot.slane %v1446, %v1450
        %v1452 = vlaneseq
        %v1453 = vshrl.u32 %v1452, 7
        %v1454 = vsub.s32 1, %v1453
        %v1455 = vrot.slane %v1446, %v1454
        %v1554 = vunpack.c.l.b16 %v1350
        %v1555 = vunpack.c.h.b16 %v1350
        %v1556 = vunpack.c.l.b16 %v1351
        %v1557 = vunpack.c.h.b16 %v1351
        %v1558 = vunpack.c.l.b16 %v1352
        %v1559 = vunpack.c.h.b16 %v1352
        %v1560 = vunpack.c.l.b16 %v1353
        %v1561 = vunpack.c.h.b16 %v1353
        %v1562 = vunpack.c.l.b16 %v1354
        %v1563 = vunpack.c.h.b16 %v1354
        %v1564 = vunpack.c.l.b16 %v1355
        %v1565 = vunpack.c.h.b16 %v1355
        %v1566 = vunpack.c.l.b16 %v1356
        %v1567 = vunpack.c.h.b16 %v1356
        %v1568 = vunpack.c.l.b16 %v1357
        %v1569 = vunpack.c.h.b16 %v1357
        %v1570 = vunpack.c.l.b16 %v1358
        %v1571 = vunpack.c.h.b16 %v1358
        %v1572 = vunpack.c.l.b16 %v1359
        %v1573 = vunpack.c.h.b16 %v1359
        %v1574 = vunpack.c.l.b16 %v1360
        %v1575 = vunpack.c.h.b16 %v1360
        %v1576 = vunpack.c.l.b16 %v1361
        %v1577 = vunpack.c.h.b16 %v1361
        %v1578 = vunpack.c.l.b16 %v1362
        %v1579 = vunpack.c.h.b16 %v1362
        %v1580 = vunpack.c.l.b16 %v1363
        %v1581 = vunpack.c.h.b16 %v1363
        %v1582 = vunpack.c.l.b16 %v1364
        %v1583 = vunpack.c.h.b16 %v1364
        %v1584 = vunpack.c.l.b16 %v1365
        %v1585 = vunpack.c.h.b16 %v1365
        %v1586 = vunpack.c.l.b16 %v1366
        %v1587 = vunpack.c.h.b16 %v1366
        %v1588 = vunpack.c.l.b16 %v1367
        %v1589 = vunpack.c.h.b16 %v1367
        %v1590 = vunpack.c.l.b16 %v1368
        %v1591 = vunpack.c.h.b16 %v1368
        %v1592 = vunpack.c.l.b16 %v1369
        %v1593 = vunpack.c.h.b16 %v1369
        %v1594 = vunpack.c.l.b16 %v1370
        %v1595 = vunpack.c.h.b16 %v1370
        %v1596 = vunpack.c.l.b16 %v1371
        %v1597 = vunpack.c.h.b16 %v1371
        %v1598 = vunpack.c.l.b16 %v1372
        %v1599 = vunpack.c.h.b16 %v1372
        %v1600 = vunpack.c.l.b16 %v1373
        %v1601 = vunpack.c.h.b16 %v1373
        %v1602 = vunpack.c.l.b16 %v1374
        %v1603 = vunpack.c.h.b16 %v1374
        %v1604 = vunpack.c.l.b16 %v1375
        %v1605 = vunpack.c.h.b16 %v1375
        %v1606 = vunpack.c.l.b16 %v1376
        %v1607 = vunpack.c.h.b16 %v1376
        %v1608 = vunpack.c.l.b16 %v1377
        %v1609 = vunpack.c.h.b16 %v1377
        %v1610 = vunpack.c.l.b16 %v1378
        %v1611 = vunpack.c.h.b16 %v1378
        %v1612 = vunpack.c.l.b16 %v1379
        %v1613 = vunpack.c.h.b16 %v1379
        %v1614 = vunpack.c.l.b16 %v1380
        %v1615 = vunpack.c.h.b16 %v1380
        %v1616 = vunpack.c.l.b16 %v1381
        %v1617 = vunpack.c.h.b16 %v1381
        %v1618 = vunpack.c.l.b16 %v1382
        %v1619 = vunpack.c.h.b16 %v1382
        %v1620 = vunpack.c.l.b16 %v1383
        %v1621 = vunpack.c.h.b16 %v1383
        %v1622 = vunpack.c.l.b16 %v1384
        %v1623 = vunpack.c.h.b16 %v1384
        %v1624 = vunpack.c.l.b16 %v1385
        %v1625 = vunpack.c.h.b16 %v1385
        %v1626 = vunpack.c.l.b16 %v1386
        %v1627 = vunpack.c.h.b16 %v1386
        %v1628 = vunpack.c.l.b16 %v1387
        %v1629 = vunpack.c.h.b16 %v1387
        %v1630 = vunpack.c.l.b16 %v1388
        %v1631 = vunpack.c.h.b16 %v1388
        %v1632 = vunpack.c.l.b16 %v1389
        %v1633 = vunpack.c.h.b16 %v1389
        %v1634 = vunpack.c.l.b16 %v1390
        %v1635 = vunpack.c.h.b16 %v1390
        %v1636 = vunpack.c.l.b16 %v1391
        %v1637 = vunpack.c.h.b16 %v1391
        %v1638 = vunpack.c.l.b16 %v1392
        %v1639 = vunpack.c.h.b16 %v1392
        %v1640 = vunpack.c.l.b16 %v1393
        %v1641 = vunpack.c.h.b16 %v1393
        %v1642 = vunpack.c.l.b16 %v1394
        %v1643 = vunpack.c.h.b16 %v1394
        %v1644 = vunpack.c.l.b16 %v1395
        %v1645 = vunpack.c.h.b16 %v1395
        %v1646 = vunpack.c.l.b16 %v1396
        %v1647 = vunpack.c.h.b16 %v1396
        %v1648 = vunpack.c.l.b16 %v1397
        %v1649 = vunpack.c.h.b16 %v1397
        %v1650 = vunpack.c.l.b16 %v1398
        %v1651 = vunpack.c.h.b16 %v1398
        %v1652 = vunpack.c.l.b16 %v1399
        %v1653 = vunpack.c.h.b16 %v1399
        %v1654 = vunpack.c.l.b16 %v1400
        %v1655 = vunpack.c.h.b16 %v1400
        %v1656 = vunpack.c.l.b16 %v1401
        %v1657 = vunpack.c.h.b16 %v1401
        %v1658 = vunpack.c.l.b16 %v1402
        %v1659 = vunpack.c.h.b16 %v1402
        %v1660 = vunpack.c.l.b16 %v1403
        %v1661 = vunpack.c.h.b16 %v1403
        %v1662 = vunpack.c.l.b16 %v1404
        %v1663 = vunpack.c.h.b16 %v1404
        %v1664 = vunpack.c.l.b16 %v1405
        %v1665 = vunpack.c.h.b16 %v1405
        %v1666 = vunpack.c.l.b16 %v1406
        %v1667 = vunpack.c.h.b16 %v1406
        %v1668 = vunpack.c.l.b16 %v1407
        %v1669 = vunpack.c.h.b16 %v1407
        %v1670 = vunpack.c.l.b16 %v1408
        %v1671 = vunpack.c.h.b16 %v1408
        %v1672 = vunpack.c.l.b16 %v1409
        %v1673 = vunpack.c.h.b16 %v1409
        %v1674 = vunpack.c.l.b16 %v1410
        %v1675 = vunpack.c.h.b16 %v1410
        %v1676 = vunpack.c.l.b16 %v1411
        %v1677 = vunpack.c.h.b16 %v1411
        %v1678 = vunpack.c.l.b16 %v1412
        %v1679 = vunpack.c.h.b16 %v1412
        %v1680 = vunpack.c.l.b16 %v1413
        %v1681 = vunpack.c.h.b16 %v1413
        %v1682 = vunpack.c.l.b16 %v1414
        %v1683 = vunpack.c.h.b16 %v1414
        %v1684 = vunpack.c.l.b16 %v1415
        %v1685 = vunpack.c.h.b16 %v1415
        %v1686 = vunpack.c.l.b16 %v1416
        %v1687 = vunpack.c.h.b16 %v1416
        %v1688 = vunpack.c.l.b16 %v1417
        %v1689 = vunpack.c.h.b16 %v1417
        %v1690 = vunpack.c.l.b16 %v1418
        %v1691 = vunpack.c.h.b16 %v1418
        %v1692 = vunpack.c.l.b16 %v1419
        %v1693 = vunpack.c.h.b16 %v1419
        %v1694 = vunpack.c.l.b16 %v1420
        %v1695 = vunpack.c.h.b16 %v1420
        %v1696 = vunpack.c.l.b16 %v1421
        %v1697 = vunpack.c.h.b16 %v1421
        %v1698 = vunpack.c.l.b16 %v1422
        %v1699 = vunpack.c.h.b16 %v1422
        %v1700 = vunpack.c.l.b16 %v1423
        %v1701 = vunpack.c.h.b16 %v1423
        %v1702 = vunpack.c.l.b16 %v1424
        %v1703 = vunpack.c.h.b16 %v1424
        %v1704 = vunpack.c.l.b16 %v1425
        %v1705 = vunpack.c.h.b16 %v1425
        %v1706 = vunpack.c.l.b16 %v1426
        %v1707 = vunpack.c.h.b16 %v1426
        %v1708 = vunpack.c.l.b16 %v1427
        %v1709 = vunpack.c.h.b16 %v1427
        %v1710 = vunpack.c.l.b16 %v1428
        %v1711 = vunpack.c.h.b16 %v1428
        %v1712 = vunpack.c.l.b16 %v1429
        %v1713 = vunpack.c.h.b16 %v1429
        %v1714 = vunpack.c.l.b16 %v1430
        %v1715 = vunpack.c.h.b16 %v1430
        %v1716 = vunpack.c.l.b16 %v1431
        %v1717 = vunpack.c.h.b16 %v1431
        %v1718 = vunpack.c.l.b16 %v1432
        %v1719 = vunpack.c.h.b16 %v1432
        %v1720 = vunpack.c.l.b16 %v1433
        %v1721 = vunpack.c.h.b16 %v1433
        %v1722 = vunpack.c.l.b16 %v1434
        %v1723 = vunpack.c.h.b16 %v1434
        %v1724 = vunpack.c.l.b16 %v1435
        %v1725 = vunpack.c.h.b16 %v1435
        %v1726 = vunpack.c.l.b16 %v1436
        %v1727 = vunpack.c.h.b16 %v1436
        %v1728 = vunpack.c.l.b16 %v1437
        %v1729 = vunpack.c.h.b16 %v1437
        %v1730 = vunpack.c.l.b16 %v1438
        %v1731 = vunpack.c.h.b16 %v1438
        %v1732 = vunpack.c.l.b16 %v1439
        %v1733 = vunpack.c.h.b16 %v1439
        %v1734 = vunpack.c.l.b16 %v1440
        %v1735 = vunpack.c.h.b16 %v1440
        %v1736 = vunpack.c.l.b16 %v1441
        %v1737 = vunpack.c.h.b16 %v1441
        %v1738 = vunpack.c.l.b16 %v1442
        %v1739 = vunpack.c.h.b16 %v1442
        %v1740 = vunpack.c.l.b16 %v1443
        %v1741 = vunpack.c.h.b16 %v1443
        %v1742 = vunpack.c.l.b16 %v1444
        %v1743 = vunpack.c.h.b16 %v1444
        %v1744 = vunpack.c.l.b16 %v1445
        %v1745 = vunpack.c.h.b16 %v1445
        %v1746 = vpack.c.b16 %v1556, %v1554
        %v1747 = vpack.c.b16 %v1557, %v1555
        %v1748 = vpack.c.b16 %v1560, %v1558
        %v1749 = vpack.c.b16 %v1561, %v1559
        %v1750 = vpack.c.b16 %v1564, %v1562
        %v1751 = vpack.c.b16 %v1565, %v1563
        %v1752 = vpack.c.b16 %v1568, %v1566
        %v1753 = vpack.c.b16 %v1569, %v1567
        %v1754 = vpack.c.b16 %v1572, %v1570
        %v1755 = vpack.c.b16 %v1573, %v1571
        %v1756 = vpack.c.b16 %v1576, %v1574
        %v1757 = vpack.c.b16 %v1577, %v1575
        %v1758 = vpack.c.b16 %v1580, %v1578
        %v1759 = vpack.c.b16 %v1581, %v1579
        %v1760 = vpack.c.b16 %v1584, %v1582
        %v1761 = vpack.c.b16 %v1585, %v1583
        %v1762 = vpack.c.b16 %v1588, %v1586
        %v1763 = vpack.c.b16 %v1589, %v1587
        %v1764 = vpack.c.b16 %v1592, %v1590
        %v1765 = vpack.c.b16 %v1593, %v1591
        %v1766 = vpack.c.b16 %v1596, %v1594
        %v1767 = vpack.c.b16 %v1597, %v1595
        %v1768 = vpack.c.b16 %v1600, %v1598
        %v1769 = vpack.c.b16 %v1601, %v1599
        %v1770 = vpack.c.b16 %v1604, %v1602
        %v1771 = vpack.c.b16 %v1605, %v1603
        %v1772 = vpack.c.b16 %v1608, %v1606
        %v1773 = vpack.c.b16 %v1609, %v1607
        %v1774 = vpack.c.b16 %v1612, %v1610
        %v1775 = vpack.c.b16 %v1613, %v1611
        %v1776 = vpack.c.b16 %v1616, %v1614
        %v1777 = vpack.c.b16 %v1617, %v1615
        %v1778 = vpack.c.b16 %v1620, %v1618
        %v1779 = vpack.c.b16 %v1621, %v1619
        %v1780 = vpack.c.b16 %v1624, %v1622
        %v1781 = vpack.c.b16 %v1625, %v1623
        %v1782 = vpack.c.b16 %v1628, %v1626
        %v1783 = vpack.c.b16 %v1629, %v1627
        %v1784 = vpack.c.b16 %v1632, %v1630
        %v1785 = vpack.c.b16 %v1633, %v1631
        %v1786 = vpack.c.b16 %v1636, %v1634
        %v1787 = vpack.c.b16 %v1637, %v1635
        %v1788 = vpack.c.b16 %v1640, %v1638
        %v1789 = vpack.c.b16 %v1641, %v1639
        %v1790 = vpack.c.b16 %v1644, %v1642
        %v1791 = vpack.c.b16 %v1645, %v1643
        %v1792 = vpack.c.b16 %v1648, %v1646
        %v1793 = vpack.c.b16 %v1649, %v1647
        %v1794 = vpack.c.b16 %v1652, %v1650
        %v1795 = vpack.c.b16 %v1653, %v1651
        %v1796 = vpack.c.b16 %v1656, %v1654
        %v1797 = vpack.c.b16 %v1657, %v1655
        %v1798 = vpack.c.b16 %v1660, %v1658
        %v1799 = vpack.c.b16 %v1661, %v1659
        %v1800 = vpack.c.b16 %v1664, %v1662
        %v1801 = vpack.c.b16 %v1665, %v1663
        %v1802 = vpack.c.b16 %v1668, %v1666
        %v1803 = vpack.c.b16 %v1669, %v1667
        %v1804 = vpack.c.b16 %v1672, %v1670
        %v1805 = vpack.c.b16 %v1673, %v1671
        %v1806 = vpack.c.b16 %v1676, %v1674
        %v1807 = vpack.c.b16 %v1677, %v1675
        %v1808 = vpack.c.b16 %v1680, %v1678
        %v1809 = vpack.c.b16 %v1681, %v1679
        %v1810 = vpack.c.b16 %v1684, %v1682
        %v1811 = vpack.c.b16 %v1685, %v1683
        %v1812 = vpack.c.b16 %v1688, %v1686
        %v1813 = vpack.c.b16 %v1689, %v1687
        %v1814 = vpack.c.b16 %v1692, %v1690
        %v1815 = vpack.c.b16 %v1693, %v1691
        %v1816 = vpack.c.b16 %v1696, %v1694
        %v1817 = vpack.c.b16 %v1697, %v1695
        %v1818 = vpack.c.b16 %v1700, %v1698
        %v1819 = vpack.c.b16 %v1701, %v1699
        %v1820 = vpack.c.b16 %v1704, %v1702
        %v1821 = vpack.c.b16 %v1705, %v1703
        %v1822 = vpack.c.b16 %v1708, %v1706
        %v1823 = vpack.c.b16 %v1709, %v1707
        %v1824 = vpack.c.b16 %v1712, %v1710
        %v1825 = vpack.c.b16 %v1713, %v1711
        %v1826 = vpack.c.b16 %v1716, %v1714
        %v1827 = vpack.c.b16 %v1717, %v1715
        %v1828 = vpack.c.b16 %v1720, %v1718
        %v1829 = vpack.c.b16 %v1721, %v1719
        %v1830 = vpack.c.b16 %v1724, %v1722
        %v1831 = vpack.c.b16 %v1725, %v1723
        %v1832 = vpack.c.b16 %v1728, %v1726
        %v1833 = vpack.c.b16 %v1729, %v1727
        %v1834 = vpack.c.b16 %v1732, %v1730
        %v1835 = vpack.c.b16 %v1733, %v1731
        %v1836 = vpack.c.b16 %v1736, %v1734
        %v1837 = vpack.c.b16 %v1737, %v1735
        %v1838 = vpack.c.b16 %v1740, %v1738
        %v1839 = vpack.c.b16 %v1741, %v1739
        %v1840 = vpack.c.b16 %v1744, %v1742
        %v1841 = vpack.c.b16 %v1745, %v1743
        %1938 = vmatprep.subr.bf16.mxu0 %v1747
        %1939 = vmatpush1.bf16.msra.mxu0 %v1746
        %1940 = vmatprep.subr.bf16.mxu0 %v1749
        %1941 = vmatpush1.bf16.msra.mxu0 %v1748
        %1942 = vmatprep.subr.bf16.mxu0 %v1751
        %1943 = vmatpush1.bf16.msra.mxu0 %v1750
        %1944 = vmatprep.subr.bf16.mxu0 %v1753
        %1945 = vmatpush1.bf16.msra.mxu0 %v1752
        %1946 = vmatprep.subr.bf16.mxu0 %v1755
        %1947 = vmatpush1.bf16.msra.mxu0 %v1754
        %1948 = vmatprep.subr.bf16.mxu0 %v1757
        %1949 = vmatpush1.bf16.msra.mxu0 %v1756
        %1950 = vmatprep.subr.bf16.mxu0 %v1759
        %1951 = vmatpush1.bf16.msra.mxu0 %v1758
        %1952 = vmatprep.subr.bf16.mxu0 %v1761
        %1953 = vmatpush1.bf16.msra.mxu0 %v1760
        %1954 = vmatprep.subr.bf16.mxu0 %v1763
        %1955 = vmatpush1.bf16.msra.mxu0 %v1762
        %1956 = vmatprep.subr.bf16.mxu0 %v1765
        %1957 = vmatpush1.bf16.msra.mxu0 %v1764
        %1958 = vmatprep.subr.bf16.mxu0 %v1767
        %1959 = vmatpush1.bf16.msra.mxu0 %v1766
        %1960 = vmatprep.subr.bf16.mxu0 %v1769
        %1961 = vmatpush1.bf16.msra.mxu0 %v1768
        %1962 = vmatprep.subr.bf16.mxu0 %v1771
        %1963 = vmatpush1.bf16.msra.mxu0 %v1770
        %1964 = vmatprep.subr.bf16.mxu0 %v1773
        %1965 = vmatpush1.bf16.msra.mxu0 %v1772
        %1966 = vmatprep.subr.bf16.mxu0 %v1775
        %1967 = vmatpush1.bf16.msra.mxu0 %v1774
        %1968 = vmatprep.subr.bf16.mxu0 %v1777
        %1969 = vmatpush1.bf16.msra.mxu0 %v1776
        %1970 = vmatprep.mubr.bf16.mxu0 %v1339
        %1971 = vmatmul.mubr.bf16.gmra.mrb[0].mxu0 %v1338
        %v1972 = vpop.f32.mrb[0].mxu0
        %v1973 = vadd.f32 %v1451, %v1972
        %v1974 = vpop.f32.mrb[0].mxu0
        %v1975 = vadd.f32 %v1455, %v1974
        %v1976 = vpop.f32.mrb[0].mxu0
        %v1977 = vadd.f32 %v1451, %v1976
        %v1978 = vpop.f32.mrb[0].mxu0
        %v1979 = vadd.f32 %v1455, %v1978
        %1980 = vmatprep.mubr.bf16.mxu0 %v1345
        %1981 = vmatmul.mubr.bf16.gmra.mrb[0].mxu0 %v1344
        %v1982 = vpop.f32.mrb[0].mxu0
        %v1983 = vadd.f32 %v1451, %v1982
        %v1984 = vpop.f32.mrb[0].mxu0
        %v1985 = vadd.f32 %v1455, %v1984
        %v1986 = vpop.f32.mrb[0].mxu0
        %v1987 = vadd.f32 %v1451, %v1986
        %v1988 = vpop.f32.mrb[0].mxu0
        %v1989 = vadd.f32 %v1455, %v1988
        %1990 = vdwg.mxu0
        %1991 = vmatprep.subr.bf16.mxu0 %v1779
        %1992 = vmatpush1.bf16.msra.mxu0 %v1778
        %1993 = vmatprep.subr.bf16.mxu0 %v1781
        %1994 = vmatpush1.bf16.msra.mxu0 %v1780
        %1995 = vmatprep.subr.bf16.mxu0 %v1783
        %1996 = vmatpush1.bf16.msra.mxu0 %v1782
        %1997 = vmatprep.subr.bf16.mxu0 %v1785
        %1998 = vmatpush1.bf16.msra.mxu0 %v1784
        %1999 = vmatprep.subr.bf16.mxu0 %v1787
        %2000 = vmatpush1.bf16.msra.mxu0 %v1786
        %2001 = vmatprep.subr.bf16.mxu0 %v1789
        %2002 = vmatpush1.bf16.msra.mxu0 %v1788
        %2003 = vmatprep.subr.bf16.mxu0 %v1791
        %2004 = vmatpush1.bf16.msra.mxu0 %v1790
        %2005 = vmatprep.subr.bf16.mxu0 %v1793
        %2006 = vmatpush1.bf16.msra.mxu0 %v1792
        %2007 = vmatprep.subr.bf16.mxu0 %v1795
        %2008 = vmatpush1.bf16.msra.mxu0 %v1794
        %2009 = vmatprep.subr.bf16.mxu0 %v1797
        %2010 = vmatpush1.bf16.msra.mxu0 %v1796
        %2011 = vmatprep.subr.bf16.mxu0 %v1799
        %2012 = vmatpush1.bf16.msra.mxu0 %v1798
        %2013 = vmatprep.subr.bf16.mxu0 %v1801
        %2014 = vmatpush1.bf16.msra.mxu0 %v1800
        %2015 = vmatprep.subr.bf16.mxu0 %v1803
        %2016 = vmatpush1.bf16.msra.mxu0 %v1802
        %2017 = vmatprep.subr.bf16.mxu0 %v1805
        %2018 = vmatpush1.bf16.msra.mxu0 %v1804
        %2019 = vmatprep.subr.bf16.mxu0 %v1807
        %2020 = vmatpush1.bf16.msra.mxu0 %v1806
        %2021 = vmatprep.subr.bf16.mxu0 %v1809
        %2022 = vmatpush1.bf16.msra.mxu0 %v1808
        %2023 = vmatprep.mubr.bf16.mxu0 %v1341
        %2024 = vmatmul.mubr.bf16.gmra.mrb[0].mxu0 %v1340
        %v2025 = vpop.f32.mrb[0].mxu0
        %v2026 = vadd.f32 %v1973, %v2025
        %v2027 = vpop.f32.mrb[0].mxu0
        %v2028 = vadd.f32 %v1975, %v2027
        %v2029 = vpop.f32.mrb[0].mxu0
        %v2030 = vadd.f32 %v1977, %v2029
        %v2031 = vpop.f32.mrb[0].mxu0
        %v2032 = vadd.f32 %v1979, %v2031
        %2033 = vmatprep.mubr.bf16.mxu0 %v1347
        %2034 = vmatmul.mubr.bf16.gmra.mrb[0].mxu0 %v1346
        %v2035 = vpop.f32.mrb[0].mxu0
        %v2036 = vadd.f32 %v1983, %v2035
        %v2037 = vpop.f32.mrb[0].mxu0
        %v2038 = vadd.f32 %v1985, %v2037
        %v2039 = vpop.f32.mrb[0].mxu0
        %v2040 = vadd.f32 %v1987, %v2039
        %v2041 = vpop.f32.mrb[0].mxu0
        %v2042 = vadd.f32 %v1989, %v2041
        %2043 = vdwg.mxu0
        %2044 = vmatprep.subr.bf16.mxu0 %v1811
        %2045 = vmatpush1.bf16.msra.mxu0 %v1810
        %2046 = vmatprep.subr.bf16.mxu0 %v1813
        %2047 = vmatpush1.bf16.msra.mxu0 %v1812
        %2048 = vmatprep.subr.bf16.mxu0 %v1815
        %2049 = vmatpush1.bf16.msra.mxu0 %v1814
        %2050 = vmatprep.subr.bf16.mxu0 %v1817
        %2051 = vmatpush1.bf16.msra.mxu0 %v1816
        %2052 = vmatprep.subr.bf16.mxu0 %v1819
        %2053 = vmatpush1.bf16.msra.mxu0 %v1818
        %2054 = vmatprep.subr.bf16.mxu0 %v1821
        %2055 = vmatpush1.bf16.msra.mxu0 %v1820
        %2056 = vmatprep.subr.bf16.mxu0 %v1823
        %2057 = vmatpush1.bf16.msra.mxu0 %v1822
        %2058 = vmatprep.subr.bf16.mxu0 %v1825
        %2059 = vmatpush1.bf16.msra.mxu0 %v1824
        %2060 = vmatprep.subr.bf16.mxu0 %v1827
        %2061 = vmatpush1.bf16.msra.mxu0 %v1826
        %2062 = vmatprep.subr.bf16.mxu0 %v1829
        %2063 = vmatpush1.bf16.msra.mxu0 %v1828
        %2064 = vmatprep.subr.bf16.mxu0 %v1831
        %2065 = vmatpush1.bf16.msra.mxu0 %v1830
        %2066 = vmatprep.subr.bf16.mxu0 %v1833
        %2067 = vmatpush1.bf16.msra.mxu0 %v1832
        %2068 = vmatprep.subr.bf16.mxu0 %v1835
        %2069 = vmatpush1.bf16.msra.mxu0 %v1834
        %2070 = vmatprep.subr.bf16.mxu0 %v1837
        %2071 = vmatpush1.bf16.msra.mxu0 %v1836
        %2072 = vmatprep.subr.bf16.mxu0 %v1839
        %2073 = vmatpush1.bf16.msra.mxu0 %v1838
        %2074 = vmatprep.subr.bf16.mxu0 %v1841
        %2075 = vmatpush1.bf16.msra.mxu0 %v1840
        %2076 = vmatprep.mubr.bf16.mxu0 %v1343
        %2077 = vmatmul.mubr.bf16.gmra.mrb[0].mxu0 %v1342
        %v2078 = vpop.f32.mrb[0].mxu0
        %v2079 = vadd.f32 %v2026, %v2078
        %v2080 = vpop.f32.mrb[0].mxu0
        %v2081 = vadd.f32 %v2028, %v2080
        %v2082 = vpop.f32.mrb[0].mxu0
        %v2083 = vadd.f32 %v2030, %v2082
        %v2084 = vpop.f32.mrb[0].mxu0
        %v2085 = vadd.f32 %v2032, %v2084
        %2086 = vmatprep.mubr.bf16.mxu0 %v1349
        %2087 = vmatmul.mubr.bf16.gmra.mrb[0].mxu0 %v1348
        %v2088 = vpop.f32.mrb[0].mxu0
        %v2089 = vadd.f32 %v2036, %v2088
        %v2090 = vpop.f32.mrb[0].mxu0
        %v2091 = vadd.f32 %v2038, %v2090
        %v2092 = vpop.f32.mrb[0].mxu0
        %v2093 = vadd.f32 %v2040, %v2092
        %v2094 = vpop.f32.mrb[0].mxu0
        %v2095 = vadd.f32 %v2042, %v2094
        %2096 = vdwg.mxu0
        %v2097 = vadd.f32 %v2079, %v2083
        %v2098 = vrot.slane %v2097, 4
        %v2099 = vadd.f32 %v2097, %v2098
        %v2100 = vrot.slane %v2099, 2
        %v2101 = vadd.f32 %v2099, %v2100
        %v2102 = vrot.slane %v2101, 1
        %v2103 = vadd.f32 %v2101, %v2102
        %v2104 = vadd.f32 %v2081, %v2085
        %v2105 = vrot.slane %v2104, 4
        %v2106 = vadd.f32 %v2104, %v2105
        %v2107 = vrot.slane %v2106, 2
        %v2108 = vadd.f32 %v2106, %v2107
        %v2109 = vrot.slane %v2108, 1
        %v2110 = vadd.f32 %v2108, %v2109
        %v2111 = vrcp.pop 16.0
        %v2112 = vmul.f32 %v2103, %v2111
        %v2113 = vmul.f32 %v2110, %v2111
        %v2114 = vld [vmem:[%s5] sm:$0xff]
        %v2116 = vcombine.high %v2114, %v2114
        %v2118 = vmul.f32 %v2112, %v2114
        %v2119 = vmul.f32 %v2113, %v2116
        %vm2120 = vcmask 1043456
        %v2121 = vsel %vm2120, %v2118, 0.0
        %v2122 = vsel %vm2120, %v2119, 0.0
        %v2123 = vadd.f32 %v2121, %v2122
        %2124 = vadd.xlane.f32.xlu0 %v2123
        %v2125 = vpop.xlane.xlu0 %2124
        %v2126 = vmax.f32 %v2125, 0.0
        %v2127 = vld [vmem:[%s6] sm:$0xff]
        %v2129 = vcombine.high %v2127, %v2127
        %v2131 = vmul.f32 %v2126, %v2127
        %v2132 = vmul.f32 %v2126, %v2129
        %v2133 = vsel %vm2120, %v2131, 0.0
        %v2134 = vrot.slane %v2133, 4
        %v2135 = vadd.f32 %v2133, %v2134
        %v2136 = vrot.slane %v2135, 2
        %v2137 = vadd.f32 %v2135, %v2136
        %v2138 = vrot.slane %v2137, 1
        %v2139 = vadd.f32 %v2137, %v2138
        %v2140 = vsel %vm2120, %v2132, 0.0
        %v2141 = vrot.slane %v2140, 4
        %v2142 = vadd.f32 %v2140, %v2141
        %v2143 = vrot.slane %v2142, 2
        %v2144 = vadd.f32 %v2142, %v2143
        %v2145 = vrot.slane %v2144, 1
        %v2146 = vadd.f32 %v2144, %v2145
        %v2147 = vxor.u32 %v2139, 2147483648
        %v2148 = vxor.u32 %v2146, 2147483648
        %v2149 = vmul.f32 %v2147, 1.442695
        %v2150 = vpow.pop %v2149
        %v2151 = vmul.f32 %v2148, 1.442695
        %v2152 = vpow.pop %v2151
        %v2153 = vadd.f32 %v2150, 1.0
        %v2154 = vadd.f32 %v2152, 1.0
        %v2155 = vrcp.pop %v2153
        %v2156 = vmul.f32 1.0, %v2155
        %v2157 = vrcp.pop %v2154
        %v2158 = vmul.f32 1.0, %v2157
        %v2159 = vmul.f32 %v2079, %v2156
        %v2160 = vmul.f32 %v2081, %v2158
        %v2161 = vmul.f32 %v2083, %v2156
        %v2162 = vmul.f32 %v2085, %v2158
        %v2163 = vld [vmem:[%s297] sm:$0xff]
        %v2164 = vld [vmem:[%s297 + $0x8] sm:$0xff]
        %v2165 = vunpack.c.l.bf16 %v2163
        %v2166 = vunpack.c.h.bf16 %v2163
        %v2167 = vunpack.c.l.bf16 %v2164
        %v2168 = vunpack.c.h.bf16 %v2164
        %v2169 = vadd.f32 %v2159, %v2165
        %v2170 = vadd.f32 %v2160, %v2166
        %v2171 = vadd.f32 %v2161, %v2167
        %v2172 = vadd.f32 %v2162, %v2168
        %v2173 = vmax.f32 %v2169, 0.0
        %v2174 = vmax.f32 %v2170, 0.0
        %v2175 = vmax.f32 %v2171, 0.0
        %v2176 = vmax.f32 %v2172, 0.0
        %2177 = vst [vmem:[%s339] sm:$0xff] %v2173
        %2178 = vst [vmem:[%s339 + $0x8] sm:$0xff] %v2174
        %2179 = vst [vmem:[%s339 + $0x10] sm:$0xff] %v2175
        %2180 = vst [vmem:[%s339 + $0x18] sm:$0xff] %v2176
        %v2181 = vadd.f32 %v2089, %v2093
        %v2182 = vrot.slane %v2181, 4
        %v2183 = vadd.f32 %v2181, %v2182
        %v2184 = vrot.slane %v2183, 2
        %v2185 = vadd.f32 %v2183, %v2184
        %v2186 = vrot.slane %v2185, 1
        %v2187 = vadd.f32 %v2185, %v2186
        %v2188 = vadd.f32 %v2091, %v2095
        %v2189 = vrot.slane %v2188, 4
        %v2190 = vadd.f32 %v2188, %v2189
        %v2191 = vrot.slane %v2190, 2
        %v2192 = vadd.f32 %v2190, %v2191
        %v2193 = vrot.slane %v2192, 1
        %v2194 = vadd.f32 %v2192, %v2193
        %v2195 = vmul.f32 %v2187, %v2111
        %v2196 = vmul.f32 %v2194, %v2111
        %v2197 = vld [vmem:[%s5] sm:$0xff]
        %v2199 = vcombine.high %v2197, %v2197
        %v2201 = vmul.f32 %v2195, %v2197
        %v2202 = vmul.f32 %v2196, %v2199
        %v2203 = vsel %vm2120, %v2201, 0.0
        %v2204 = vsel %vm2120, %v2202, 0.0
        %v2205 = vadd.f32 %v2203, %v2204
        %2206 = vadd.xlane.f32.xlu0 %v2205
        %v2207 = vpop.xlane.xlu0 %2206
        %v2208 = vmax.f32 %v2207, 0.0
        %v2209 = vld [vmem:[%s6] sm:$0xff]
        %v2211 = vcombine.high %v2209, %v2209
        %v2213 = vmul.f32 %v2208, %v2209
        %v2214 = vmul.f32 %v2208, %v2211
        %v2215 = vsel %vm2120, %v2213, 0.0
        %v2216 = vrot.slane %v2215, 4
        %v2217 = vadd.f32 %v2215, %v2216
        %v2218 = vrot.slane %v2217, 2
        %v2219 = vadd.f32 %v2217, %v2218
        %v2220 = vrot.slane %v2219, 1
        %v2221 = vadd.f32 %v2219, %v2220
        %v2222 = vsel %vm2120, %v2214, 0.0
        %v2223 = vrot.slane %v2222, 4
        %v2224 = vadd.f32 %v2222, %v2223
        %v2225 = vrot.slane %v2224, 2
        %v2226 = vadd.f32 %v2224, %v2225
        %v2227 = vrot.slane %v2226, 1
        %v2228 = vadd.f32 %v2226, %v2227
        %v2229 = vxor.u32 %v2221, 2147483648
        %v2230 = vxor.u32 %v2228, 2147483648
        %v2231 = vmul.f32 %v2229, 1.442695
        %v2232 = vpow.pop %v2231
        %v2233 = vmul.f32 %v2230, 1.442695
        %v2234 = vpow.pop %v2233
        %v2235 = vadd.f32 %v2232, 1.0
        %v2236 = vadd.f32 %v2234, 1.0
        %v2237 = vrcp.pop %v2235
        %v2238 = vmul.f32 1.0, %v2237
        %v2239 = vrcp.pop %v2236
        %v2240 = vmul.f32 1.0, %v2239
        %v2241 = vmul.f32 %v2089, %v2238
        %v2242 = vmul.f32 %v2091, %v2240
        %v2243 = vmul.f32 %v2093, %v2238
        %v2244 = vmul.f32 %v2095, %v2240
        %s2245 = scalar_lea.vmem %s297, 16 [#allocation3]
        %v2246 = vld [vmem:[%s2245] sm:$0xff]
        %v2247 = vld [vmem:[%s2245 + $0x8] sm:$0xff]
        %v2248 = vunpack.c.l.bf16 %v2246
        %v2249 = vunpack.c.h.bf16 %v2246
        %v2250 = vunpack.c.l.bf16 %v2247
        %v2251 = vunpack.c.h.bf16 %v2247
        %v2252 = vadd.f32 %v2241, %v2248
        %v2253 = vadd.f32 %v2242, %v2249
        %v2254 = vadd.f32 %v2243, %v2250
        %v2255 = vadd.f32 %v2244, %v2251
        %v2256 = vmax.f32 %v2252, 0.0
        %v2257 = vmax.f32 %v2253, 0.0
        %v2258 = vmax.f32 %v2254, 0.0
        %v2259 = vmax.f32 %v2255, 0.0
        %s2260 = scalar_lea.vmem %s339, 32 [#allocation11]
        %2261 = vst [vmem:[%s2260] sm:$0xff] %v2256
        %2262 = vst [vmem:[%s2260 + $0x8] sm:$0xff] %v2257
        %2263 = vst [vmem:[%s2260 + $0x10] sm:$0xff] %v2258
        %2264 = vst [vmem:[%s2260 + $0x18] sm:$0xff] %v2259
        %s2265 = sand.u32 %s186, 1
        %s2266 = scalar_lea.sflag [#allocation5], %s2265
        %s2267 = sand.u32 %s186, 1
        %s2268 = smul.addr %s2267, 64
        %s2269 = scalar_lea.vmem [#allocation11], %s2268
        // Predicated region
        $region65: #{tpu_custom_call.1} parent=47 // pred_check
          %p2270 = pneg %p196
        $region66: #{tpu_custom_call.1} parent=47 // pred_check_branch
          %2272 = sbr.rel (%p2270) target = $region68
        $region67: #{tpu_custom_call.1} parent=47 // pred_region
          %s2273 = smul.u32 2, %s26
          %s2275 = ssub.s32 1024, 1024
          %2276 = vsyncadd %s2266, %s2275
          %s2277 = smul.addr %s2273, 4
          %s2278 = smul.addr %s2277, 128
          %s2279 = scalar_lea.hbm %s7, %s2278
          %s2280 = sshll.u32 %s2269, 4
          %s2281 = int_to_ptr.vmem [resolvable:$true] %s2280
          %2286 = dma.vmem_to_hbm [thread:$0]  %s2281, 1024, %s2279, %s2266, 256, 256, 16
        $region68: #{tpu_custom_call.1} parent=47 // pred_fallthru
          _
      $region48: #{tpu_custom_call.1} parent=5 // pred_fallthru
        _
      %p2287 = scmp.le.s32.totalorder 2, %s21
      // Predicated region
      $region69: #{tpu_custom_call.1} parent=5 // pred_check
        %p2288 = pneg %p2287
      $region70: #{tpu_custom_call.1} parent=5 // pred_check_branch
        %2290 = sbr.rel (%p2288) target = $region72
      $region71: #{tpu_custom_call.1} parent=5 // pred_region
        %s2291 = ssub.s32 %s21, 2
        // Predicated region
        $region73: #{tpu_custom_call.1} parent=71 // pred_check
          %p2292 = pneg %p202
        $region74: #{tpu_custom_call.1} parent=71 // pred_check_branch
          %2294 = sbr.rel (%p2292) target = $region76
        $region75: #{tpu_custom_call.1} parent=71 // pred_region
          %s2295 = sand.u32 %s187, 1
          %s2296 = scalar_lea.sflag [#allocation5], %s2295
          %s2297 = sand.u32 %s187, 1
          %s2298 = smul.addr %s2297, 64
          %s2299 = scalar_lea.vmem [#allocation11], %s2298
          %2300 = dma.done %s2296, 1024
        $region76: #{tpu_custom_call.1} parent=71 // pred_fallthru
          _
      $region72: #{tpu_custom_call.1} parent=5 // pred_fallthru
        _
    $region6: #{tpu_custom_call.1} parent=1 // loop_footer
      %s25 = sadd.s32 1, %s21
    $region7: #{tpu_custom_call.1} parent=1 // loop_footer_branch
      %20 = sbr.rel target = $region3
    $region8: #{tpu_custom_call.1} parent=1 // loop_exit
      _
    %2301 = vsyncpa [#allocation4], 1
    %s2302 = scalar_lea.sflag [#allocation4], 1
    %2303 = vsyncpa %s2302, 1
    %2304 = vsyncpa [#allocation7], 1
    %2305 = vsyncpa [#allocation10], 1
    %2306 = vsyncpa [#allocation5], 1
    %s2307 = scalar_lea.sflag [#allocation5], 1
    %2308 = vsyncpa %s2307, 1

</llo_original>
